<compile_context>
chip_gen: v5e
topology: v5e:2x2
jax: 0.10.0
libtpu: 0.0.40
codegen_flags: <defaults>
</compile_context>

<pallas_src>
import math
from functools import partial

import numpy as np
import jax
import jax.numpy as jnp
from jax.experimental import pallas as pl
from jax.experimental.pallas import tpu as pltpu

VMEM = pltpu.MemorySpace.VMEM


# ---------------- fused per-layer kernel ----------------

def _pooled_layer_kernel(x_ref, a_ref, wr_ref, we_ref, b_ref, ws_ref,
                         m_ref, mt_ref, k_ref, prev_ref,
                         h_ref, keep_ref, score_ref, romax_ref, romean_ref):
    """GraphConv+ReLU -> TopKPooling(sigmoid) -> x*score*mask -> readout."""
    x = x_ref[...]                        # (N, F)
    prev = prev_ref[...]                  # (N, 1): 1.0 = node alive before pool
    m = m_ref[...]                        # (N, G) one-hot graph membership
    mt = mt_ref[...]                      # (G, N)
    n = x.shape[0]
    num_graphs = m.shape[1]

    # GraphConv (aggr='add') + ReLU:  relu(X @ Wr + (A @ X) @ We + b)
    # NOTE: could stack [X | A@X] @ [Wr; We] into one MXU push; two dots are
    # kept for lowering robustness at these tiny contraction depths.
    agg = jnp.dot(a_ref[...], x, preferred_element_type=jnp.float32)
    h = jnp.maximum(
        jnp.dot(x, wr_ref[...], preferred_element_type=jnp.float32)
        + jnp.dot(agg, we_ref[...], preferred_element_type=jnp.float32)
        + b_ref[...], 0.0)                # (N, D)
    d = h.shape[1]

    # TopKPooling score: sigmoid(h @ (w / ||w||)) as an MXU matvec.
    s = jax.nn.sigmoid(jnp.dot(h, ws_ref[...],
                               preferred_element_type=jnp.float32))   # (N, 1)
    score_ref[...] = s

    # ---- per-graph top-k keep mask, fully on device (pairwise ranking) ----
    # t = score for alive nodes, -1 for dead ones (sigmoid > 0 > -1).
    t = jnp.where(prev > 0.0, s, -1.0)                          # (N, 1)
    ii = jax.lax.broadcasted_iota(jnp.int32, (n, n), 0)
    jj = jax.lax.broadcasted_iota(jnp.int32, (n, n), 1)
    same = jnp.dot(m, mt, preferred_element_type=jnp.float32)   # same-graph mask
    # Spread t along rows / columns via diag-matmuls: transpose-free and the
    # same rounding is applied on both sides of the comparison.
    t_diag = jnp.where(ii == jj, t, 0.0)                        # diag(t)
    t_j = jnp.dot(same, t_diag, preferred_element_type=jnp.float32)   # t[j]*same
    t_i = jnp.dot(t_diag, same, preferred_element_type=jnp.float32)   # t[i]*same
    better = jnp.where(
        ((t_j > t_i) | ((t_j == t_i) & (jj < ii))) & (same > 0.0),
        1.0, 0.0)                                               # j outranks i
    rank = jnp.sum(better, axis=1, keepdims=True)               # (N, 1)
    k_node = jnp.dot(m, k_ref[...], preferred_element_type=jnp.float32)
    keep = jnp.where((rank < k_node) & (prev > 0.0), 1.0, 0.0)  # (N, 1)
    keep_ref[...] = keep

    # pooled node features: x[perm] * score[perm]; dropped rows zeroed.
    hs = h * s * keep                                           # (N, D), >= 0
    h_ref[...] = hs

    # readout: global_max_pool / global_mean_pool over kept nodes per graph.
    cnt = jnp.maximum(jnp.dot(mt, keep, preferred_element_type=jnp.float32), 1.0)
    romean_ref[...] = jnp.dot(mt, hs, preferred_element_type=jnp.float32) / cnt
    row_ids = jax.lax.broadcasted_iota(jnp.int32, (num_graphs, d), 0)
    mx = jnp.zeros((num_graphs, d), jnp.float32)
    for gi in range(num_graphs):     # static unroll; hs >= 0 so mask-by-zero max
        mg = jnp.max(hs * m[:, gi:gi + 1], axis=0, keepdims=True)      # (1, D)
        mx = jnp.where(row_ids == gi, mg, mx)
    romax_ref[...] = mx


def pooled_layer(x, a, w_root, w_rel, b, w_score, m, mt, k_col, prev):
    n = x.shape[0]
    d = w_root.shape[1]
    g = m.shape[1]
    return pl.pallas_call(
        _pooled_layer_kernel,
        out_shape=(jax.ShapeDtypeStruct((n, d), jnp.float32),   # pooled features
                   jax.ShapeDtypeStruct((n, 1), jnp.float32),   # keep mask
                   jax.ShapeDtypeStruct((n, 1), jnp.float32),   # scores
                   jax.ShapeDtypeStruct((g, d), jnp.float32),   # global max pool
                   jax.ShapeDtypeStruct((g, d), jnp.float32)),  # global mean pool
        in_specs=[pl.BlockSpec(memory_space=VMEM)] * 10,
        out_specs=(pl.BlockSpec(memory_space=VMEM),) * 5,
    )(x, a, w_root, w_rel, b, w_score, m, mt, k_col, prev)


# ---------------- fused classifier head ----------------

def _head_kernel(g32_ref, w1_ref, b1_ref, gamma_ref, beta_ref, rmean_ref,
                 rvar_ref, w2_ref, b2_ref, out_ref, gemb_ref):
    g32 = g32_ref[...]
    h = jnp.maximum(
        jnp.dot(g32, w1_ref[...], preferred_element_type=jnp.float32)
        + b1_ref[...], 0.0)
    # BatchNorm1d in eval mode (running statistics), eps = 1e-5
    g_emb = ((h - rmean_ref[...]) * jax.lax.rsqrt(rvar_ref[...] + 1e-5)
             * gamma_ref[...] + beta_ref[...])
    gemb_ref[...] = g_emb
    # F.dropout(p=0.5) twice is identity in eval mode
    logits = (jnp.dot(g_emb, w2_ref[...], preferred_element_type=jnp.float32)
              + b2_ref[...])
    z = logits - jnp.max(logits, axis=1, keepdims=True)
    out_ref[...] = z - jnp.log(jnp.sum(jnp.exp(z), axis=1, keepdims=True))


def head(g32, w1, b1, gamma, beta, rmean, rvar, w2, b2):
    g = g32.shape[0]
    d = w1.shape[1]
    c = w2.shape[1]
    return pl.pallas_call(
        _head_kernel,
        out_shape=(jax.ShapeDtypeStruct((g, c), jnp.float32),
                   jax.ShapeDtypeStruct((g, d), jnp.float32)),
        in_specs=[pl.BlockSpec(memory_space=VMEM)] * 9,
        out_specs=(pl.BlockSpec(memory_space=VMEM),) * 2,
    )(g32, w1, b1, gamma, beta, rmean, rvar, w2, b2)


# ---------------- forward (single jitted program, no host syncs) ----------

@partial(jax.jit, static_argnames=("k1", "k2"))
def topk_forward(params, x, a, m, k1, k2):
    n = x.shape[0]
    num_graphs = m.shape[1]
    mt = jnp.transpose(m)                                  # (G, N)
    alive0 = jnp.ones((n, 1), jnp.float32)
    k1_col = jnp.asarray(k1, jnp.float32).reshape(num_graphs, 1)
    k2_col = jnp.asarray(k2, jnp.float32).reshape(num_graphs, 1)

    def norm_w(w):  # (1, D) -> (D, 1), pre-normalized with eps (no in-kernel sqrt)
        return jnp.transpose(w / jnp.maximum(jnp.sqrt(jnp.sum(w * w)), 1e-12))

    # layer 1: conv1 + relu -> pool1 -> [gmp | gap]
    h1, keep1, s1, mx1, mean1 = pooled_layer(
        x, a, params["conv1_w_root"], params["conv1_w_rel"], params["conv1_b"],
        norm_w(params["pool1_w"]), m, mt, k1_col, alive0)
    x1 = jnp.concatenate([mx1, mean1], axis=1)

    # layer 2 on the pooled graph: same A, dropped rows of h1 are already zero
    # so the filtered adjacency never needs to be materialized.
    h2, keep2, s2, mx2, mean2 = pooled_layer(
        h1, a, params["conv2_w_root"], params["conv2_w_rel"], params["conv2_b"],
        norm_w(params["pool2_w"]), m, mt, k2_col, keep1)
    x2 = jnp.concatenate([mx2, mean2], axis=1)

    out, g_emb = head(x1 + x2, params["lin1_w"], params["lin1_b"],
                      params["bn1_gamma"], params["bn1_beta"],
                      params["bn1_rmean"], params["bn1_rvar"],
                      params["lin2_w"], params["lin2_b"])

    # score_1 = score[perm] of pool1: kept scores, descending per graph.
    # k per graph is static -> static shapes; stays on device (no host sync).
    s1_flat = s1[:, 0]
    parts = []
    for gi in range(num_graphs):
        masked = jnp.where(m[:, gi] > 0, s1_flat, -jnp.inf)
        parts.append(jax.lax.top_k(masked, k1[gi])[0])
    score_1 = jnp.concatenate(parts, axis=0)
    return out, g_emb, params["pool1_w"], score_1


# ---------------- graph-structure prep (once per batch, on device) --------

def build_dense_graph(edge_index, batch, num_graphs):
    n = int(batch.shape[0])
    src = jnp.asarray(edge_index[0], dtype=jnp.int32)
    dst = jnp.asarray(edge_index[1], dtype=jnp.int32)
    a = jnp.zeros((n, n), jnp.float32).at[dst, src].set(1.0)   # A[dst, src] = 1
    m = jax.nn.one_hot(jnp.asarray(batch, dtype=jnp.int32), num_graphs,
                       dtype=jnp.float32)                      # (N, G)
    return a, m


def topk_sizes(batch, num_graphs, ratio=0.5):
    counts = np.bincount(np.asarray(batch), minlength=num_graphs)
    k1 = tuple(int(math.ceil(ratio * c)) for c in counts)
    k2 = tuple(int(math.ceil(ratio * c)) for c in k1)
    return k1, k2


# ---------------- deterministic parameter init ----------------

def init_params(key, in_channels, out_channels, embed_dim):
    ks = jax.random.split(key, 8)

    def w(k, shape, scale=0.1):
        return (scale * jax.random.normal(k, shape)).astype(jnp.float32)

    return dict(
        conv1_w_root=w(ks[0], (in_channels, embed_dim)),
        conv1_w_rel=w(ks[1], (in_channels, embed_dim)),
        conv1_b=jnp.zeros((1, embed_dim), jnp.float32),
        pool1_w=w(ks[2], (1, embed_dim)),
        conv2_w_root=w(ks[3], (embed_dim, embed_dim)),
        conv2_w_rel=w(ks[4], (embed_dim, embed_dim)),
        conv2_b=jnp.zeros((1, embed_dim), jnp.float32),
        pool2_w=w(ks[5], (1, embed_dim)),
        lin1_w=w(ks[6], (2 * embed_dim, embed_dim)),
        lin1_b=jnp.zeros((1, embed_dim), jnp.float32),
        bn1_gamma=jnp.ones((1, embed_dim), jnp.float32),
        bn1_beta=jnp.zeros((1, embed_dim), jnp.float32),
        bn1_rmean=jnp.zeros((1, embed_dim), jnp.float32),
        bn1_rvar=jnp.ones((1, embed_dim), jnp.float32),
        lin2_w=w(ks[7], (embed_dim, out_channels)),
        lin2_b=jnp.zeros((1, out_channels), jnp.float32),
    )


if __name__ == "__main__":
    in_channels = 4        # num_node_features
    out_channels = 3
    embed_dim = 16
    num_graphs = 2

    key = jax.random.PRNGKey(0)
    kx, kp = jax.random.split(key)

    # Two graphs: graph 0 has nodes 0..9, graph 1 has nodes 10..15 (N = 16)
    n = 16
    batch = np.array([0] * 10 + [1] * 6, dtype=np.int32)
    edges = []
    for i in range(10):
        edges.append((i, (i + 1) % 10))
        edges.append(((i + 1) % 10, i))
    for i in range(6):
        edges.append((10 + i, 10 + (i + 2) % 6))
        edges.append((10 + (i + 2) % 6, 10 + i))
    edge_index = np.asarray(edges, dtype=np.int32).T    # (2, E): [src; dst]

    x = jax.random.normal(kx, (n, in_channels), dtype=jnp.float32)
    params = init_params(kp, in_channels, out_channels, embed_dim)

    a, m = build_dense_graph(edge_index, batch, num_graphs)   # on device, once
    k1, k2 = topk_sizes(batch, num_graphs, ratio=0.5)         # static structure

    out, g_emb, pool1_w, score_1 = topk_forward(params, x, a, m, k1, k2)
    jax.block_until_ready((out, g_emb, pool1_w, score_1))
    assert out.shape == (num_graphs, out_channels)
    assert g_emb.shape == (num_graphs, embed_dim)
    assert pool1_w.shape == (1, embed_dim)
    assert score_1.shape == (sum(k1),)
    print("KERNEL_OK")
</pallas_src>

<mosaic_0001>
module attributes {stable_mosaic.version = 11 : i64} {
  func.func @_pooled_layer_kernel(%arg0: memref<16x16xf32, #tpu.memory_space<vmem>>, %arg1: memref<16x16xf32, #tpu.memory_space<vmem>>, %arg2: memref<16x16xf32, #tpu.memory_space<vmem>>, %arg3: memref<16x16xf32, #tpu.memory_space<vmem>>, %arg4: memref<1x16xf32, #tpu.memory_space<vmem>>, %arg5: memref<16x1xf32, #tpu.memory_space<vmem>>, %arg6: memref<16x2xf32, #tpu.memory_space<vmem>>, %arg7: memref<2x16xf32, #tpu.memory_space<vmem>>, %arg8: memref<2x1xf32, #tpu.memory_space<vmem>>, %arg9: memref<16x1xf32, #tpu.memory_space<vmem>>, %arg10: memref<16x16xf32, #tpu.memory_space<vmem>>, %arg11: memref<16x1xf32, #tpu.memory_space<vmem>>, %arg12: memref<16x1xf32, #tpu.memory_space<vmem>>, %arg13: memref<2x16xf32, #tpu.memory_space<vmem>>, %arg14: memref<2x16xf32, #tpu.memory_space<vmem>>) attributes {dimension_semantics = [], scalar_prefetch = 0 : i64, scratch_operands = 0 : i64, tpu.core_type = #tpu.core_type<tc>} {
    %c0 = arith.constant 0 : index
    %c0_0 = arith.constant 0 : index
    %0 = vector.load %arg0[%c0, %c0_0] : memref<16x16xf32, #tpu.memory_space<vmem>>, vector<16x16xf32>
    %c0_1 = arith.constant 0 : index
    %c0_2 = arith.constant 0 : index
    %1 = vector.load %arg9[%c0_1, %c0_2] : memref<16x1xf32, #tpu.memory_space<vmem>>, vector<16x1xf32>
    %c0_3 = arith.constant 0 : index
    %c0_4 = arith.constant 0 : index
    %2 = vector.load %arg6[%c0_3, %c0_4] : memref<16x2xf32, #tpu.memory_space<vmem>>, vector<16x2xf32>
    %c0_5 = arith.constant 0 : index
    %c0_6 = arith.constant 0 : index
    %3 = vector.load %arg7[%c0_5, %c0_6] : memref<2x16xf32, #tpu.memory_space<vmem>>, vector<2x16xf32>
    %c0_7 = arith.constant 0 : index
    %c0_8 = arith.constant 0 : index
    %4 = vector.load %arg1[%c0_7, %c0_8] : memref<16x16xf32, #tpu.memory_space<vmem>>, vector<16x16xf32>
    %cst = arith.constant dense<0.000000e+00> : vector<16x16xf32>
    %5 = tpu.matmul %4, %0, %cst {dimension_numbers = #tpu.dot_dimension_numbers<[1], [0], [0], [1], [0, 0, 1, 1], [], []>} : vector<16x16xf32>, vector<16x16xf32>, vector<16x16xf32> -> vector<16x16xf32>
    %c0_9 = arith.constant 0 : index
    %c0_10 = arith.constant 0 : index
    %6 = vector.load %arg2[%c0_9, %c0_10] : memref<16x16xf32, #tpu.memory_space<vmem>>, vector<16x16xf32>
    %cst_11 = arith.constant dense<0.000000e+00> : vector<16x16xf32>
    %7 = tpu.matmul %0, %6, %cst_11 {dimension_numbers = #tpu.dot_dimension_numbers<[1], [0], [0], [1], [0, 0, 1, 1], [], []>} : vector<16x16xf32>, vector<16x16xf32>, vector<16x16xf32> -> vector<16x16xf32>
    %c0_12 = arith.constant 0 : index
    %c0_13 = arith.constant 0 : index
    %8 = vector.load %arg3[%c0_12, %c0_13] : memref<16x16xf32, #tpu.memory_space<vmem>>, vector<16x16xf32>
    %cst_14 = arith.constant dense<0.000000e+00> : vector<16x16xf32>
    %9 = tpu.matmul %5, %8, %cst_14 {dimension_numbers = #tpu.dot_dimension_numbers<[1], [0], [0], [1], [0, 0, 1, 1], [], []>} : vector<16x16xf32>, vector<16x16xf32>, vector<16x16xf32> -> vector<16x16xf32>
    %10 = arith.addf %7, %9 : vector<16x16xf32>
    %c0_15 = arith.constant 0 : index
    %c0_16 = arith.constant 0 : index
    %11 = vector.load %arg4[%c0_15, %c0_16] : memref<1x16xf32, #tpu.memory_space<vmem>>, vector<1x16xf32>
    %12 = vector.broadcast %11 : vector<1x16xf32> to vector<16x16xf32>
    %13 = arith.addf %10, %12 : vector<16x16xf32>
    %cst_17 = arith.constant 0.000000e+00 : f32
    %14 = vector.broadcast %cst_17 : f32 to vector<16x16xf32>
    %15 = arith.maximumf %13, %14 : vector<16x16xf32>
    %c0_18 = arith.constant 0 : index
    %c0_19 = arith.constant 0 : index
    %16 = vector.load %arg5[%c0_18, %c0_19] : memref<16x1xf32, #tpu.memory_space<vmem>>, vector<16x1xf32>
    %cst_20 = arith.constant dense<0.000000e+00> : vector<16x1xf32>
    %17 = tpu.matmul %15, %16, %cst_20 {dimension_numbers = #tpu.dot_dimension_numbers<[1], [0], [0], [1], [0, 0, 1, 1], [], []>} : vector<16x16xf32>, vector<16x1xf32>, vector<16x1xf32> -> vector<16x1xf32>
    %18 = arith.negf %17 : vector<16x1xf32>
    %19 = math.exp %18 : vector<16x1xf32>
    %cst_21 = arith.constant 1.000000e+00 : f32
    %20 = vector.broadcast %cst_21 : f32 to vector<16x1xf32>
    %21 = arith.addf %20, %19 : vector<16x1xf32>
    %22 = arith.divf %20, %21 : vector<16x1xf32>
    %c0_22 = arith.constant 0 : index
    %c0_23 = arith.constant 0 : index
    %23 = vector.load %arg12[%c0_22, %c0_23] : memref<16x1xf32, #tpu.memory_space<vmem>>, vector<16x1xf32>
    tpu.vector_store %arg12[%c0_22, %c0_23], %22 {strides = array<i32>} : memref<16x1xf32, #tpu.memory_space<vmem>>, vector<16x1xf32>,
    %cst_24 = arith.constant 0.000000e+00 : f32
    %24 = vector.broadcast %cst_24 : f32 to vector<16x1xf32>
    %25 = arith.cmpf ogt, %1, %24 : vector<16x1xf32>
    %cst_25 = arith.constant -1.000000e+00 : f32
    %26 = vector.broadcast %cst_25 : f32 to vector<16x1xf32>
    %27 = arith.select %25, %22, %26 : vector<16x1xi1>, vector<16x1xf32>
    %28 = tpu.iota {dimensions = array<i32: 0>} : vector<16x16xi32>
    %29 = tpu.iota {dimensions = array<i32: 1>} : vector<16x16xi32>
    %cst_26 = arith.constant dense<0.000000e+00> : vector<16x16xf32>
    %30 = tpu.matmul %2, %3, %cst_26 {dimension_numbers = #tpu.dot_dimension_numbers<[1], [0], [0], [1], [0, 0, 1, 1], [], []>} : vector<16x2xf32>, vector<2x16xf32>, vector<16x16xf32> -> vector<16x16xf32>
    %31 = arith.cmpi eq, %28, %29 : vector<16x16xi32>
    %cst_27 = arith.constant 0.000000e+00 : f32
    %32 = vector.shape_cast %27 : vector<16x1xf32> to vector<16x1xf32>
    %33 = vector.broadcast %32 : vector<16x1xf32> to vector<16x16xf32>
    %34 = vector.broadcast %cst_27 : f32 to vector<16x16xf32>
    %35 = arith.select %31, %33, %34 : vector<16x16xi1>, vector<16x16xf32>
    %cst_28 = arith.constant dense<0.000000e+00> : vector<16x16xf32>
    %36 = tpu.matmul %30, %35, %cst_28 {dimension_numbers = #tpu.dot_dimension_numbers<[1], [0], [0], [1], [0, 0, 1, 1], [], []>} : vector<16x16xf32>, vector<16x16xf32>, vector<16x16xf32> -> vector<16x16xf32>
    %cst_29 = arith.constant dense<0.000000e+00> : vector<16x16xf32>
    %37 = tpu.matmul %35, %30, %cst_29 {dimension_numbers = #tpu.dot_dimension_numbers<[1], [0], [0], [1], [0, 0, 1, 1], [], []>} : vector<16x16xf32>, vector<16x16xf32>, vector<16x16xf32> -> vector<16x16xf32>
    %38 = arith.cmpf ogt, %36, %37 : vector<16x16xf32>
    %39 = arith.cmpf oeq, %36, %37 : vector<16x16xf32>
    %40 = arith.cmpi slt, %29, %28 : vector<16x16xi32>
    %41 = arith.andi %39, %40 : vector<16x16xi1>
    %42 = arith.ori %38, %41 : vector<16x16xi1>
    %cst_30 = arith.constant 0.000000e+00 : f32
    %43 = vector.broadcast %cst_30 : f32 to vector<16x16xf32>
    %44 = arith.cmpf ogt, %30, %43 : vector<16x16xf32>
    %45 = arith.andi %42, %44 : vector<16x16xi1>
    %cst_31 = arith.constant 1.000000e+00 : f32
    %cst_32 = arith.constant 0.000000e+00 : f32
    %46 = vector.broadcast %cst_31 : f32 to vector<16x16xf32>
    %47 = vector.broadcast %cst_32 : f32 to vector<16x16xf32>
    %48 = arith.select %45, %46, %47 : vector<16x16xi1>, vector<16x16xf32>
    %cst_33 = arith.constant dense<0.000000e+00> : vector<16xf32>
    %49 = vector.multi_reduction <add>, %48, %cst_33 [1] : vector<16x16xf32> to vector<16xf32>
    %50 = vector.shape_cast %49 : vector<16xf32> to vector<16x1xf32>
    %c0_34 = arith.constant 0 : index
    %c0_35 = arith.constant 0 : index
    %51 = vector.load %arg8[%c0_34, %c0_35] : memref<2x1xf32, #tpu.memory_space<vmem>>, vector<2x1xf32>
    %cst_36 = arith.constant dense<0.000000e+00> : vector<16x1xf32>
    %52 = tpu.matmul %2, %51, %cst_36 {dimension_numbers = #tpu.dot_dimension_numbers<[1], [0], [0], [1], [0, 0, 1, 1], [], []>} : vector<16x2xf32>, vector<2x1xf32>, vector<16x1xf32> -> vector<16x1xf32>
    %53 = arith.cmpf olt, %50, %52 : vector<16x1xf32>
    %cst_37 = arith.constant 0.000000e+00 : f32
    %54 = vector.broadcast %cst_37 : f32 to vector<16x1xf32>
    %55 = arith.cmpf ogt, %1, %54 : vector<16x1xf32>
    %56 = arith.andi %53, %55 : vector<16x1xi1>
    %cst_38 = arith.constant 1.000000e+00 : f32
    %cst_39 = arith.constant 0.000000e+00 : f32
    %57 = vector.broadcast %cst_38 : f32 to vector<16x1xf32>
    %58 = vector.broadcast %cst_39 : f32 to vector<16x1xf32>
    %59 = arith.select %56, %57, %58 : vector<16x1xi1>, vector<16x1xf32>
    %c0_40 = arith.constant 0 : index
    %c0_41 = arith.constant 0 : index
    %60 = vector.load %arg11[%c0_40, %c0_41] : memref<16x1xf32, #tpu.memory_space<vmem>>, vector<16x1xf32>
    tpu.vector_store %arg11[%c0_40, %c0_41], %59 {strides = array<i32>} : memref<16x1xf32, #tpu.memory_space<vmem>>, vector<16x1xf32>,
    %61 = vector.broadcast %22 : vector<16x1xf32> to vector<16x16xf32>
    %62 = arith.mulf %15, %61 : vector<16x16xf32>
    %63 = vector.broadcast %59 : vector<16x1xf32> to vector<16x16xf32>
    %64 = arith.mulf %62, %63 : vector<16x16xf32>
    %c0_42 = arith.constant 0 : index
    %c0_43 = arith.constant 0 : index
    %65 = vector.load %arg10[%c0_42, %c0_43] : memref<16x16xf32, #tpu.memory_space<vmem>>, vector<16x16xf32>
    tpu.vector_store %arg10[%c0_42, %c0_43], %64 {strides = array<i32>} : memref<16x16xf32, #tpu.memory_space<vmem>>, vector<16x16xf32>,
    %cst_44 = arith.constant dense<0.000000e+00> : vector<2x1xf32>
    %66 = tpu.matmul %3, %59, %cst_44 {dimension_numbers = #tpu.dot_dimension_numbers<[1], [0], [0], [1], [0, 0, 1, 1], [], []>} : vector<2x16xf32>, vector<16x1xf32>, vector<2x1xf32> -> vector<2x1xf32>
    %cst_45 = arith.constant 1.000000e+00 : f32
    %67 = vector.broadcast %cst_45 : f32 to vector<2x1xf32>
    %68 = arith.maximumf %66, %67 : vector<2x1xf32>
    %cst_46 = arith.constant dense<0.000000e+00> : vector<2x16xf32>
    %69 = tpu.matmul %3, %64, %cst_46 {dimension_numbers = #tpu.dot_dimension_numbers<[1], [0], [0], [1], [0, 0, 1, 1], [], []>} : vector<2x16xf32>, vector<16x16xf32>, vector<2x16xf32> -> vector<2x16xf32>
    %70 = vector.broadcast %68 : vector<2x1xf32> to vector<2x16xf32>
    %71 = arith.divf %69, %70 : vector<2x16xf32>
    %c0_47 = arith.constant 0 : index
    %c0_48 = arith.constant 0 : index
    %72 = vector.load %arg14[%c0_47, %c0_48] : memref<2x16xf32, #tpu.memory_space<vmem>>, vector<2x16xf32>
    tpu.vector_store %arg14[%c0_47, %c0_48], %71 {strides = array<i32>} : memref<2x16xf32, #tpu.memory_space<vmem>>, vector<2x16xf32>,
    %73 = tpu.iota {dimensions = array<i32: 0>} : vector<2x16xi32>
    %cst_49 = arith.constant 0.000000e+00 : f32
    %74 = vector.broadcast %cst_49 : f32 to vector<2x16xf32>
    %75 = vector.extract_strided_slice %2 {offsets = [0, 0], sizes = [16, 1], strides = [1, 1]} : vector<16x2xf32> to vector<16x1xf32>
    %76 = vector.broadcast %75 : vector<16x1xf32> to vector<16x16xf32>
    %77 = arith.mulf %64, %76 : vector<16x16xf32>
    %cst_50 = arith.constant dense<0xFF800000> : vector<16xf32>
    %78 = vector.multi_reduction <maximumf>, %77, %cst_50 [0] : vector<16x16xf32> to vector<16xf32>
    %79 = vector.shape_cast %78 : vector<16xf32> to vector<1x16xf32>
    %c0_i32 = arith.constant 0 : i32
    %80 = vector.broadcast %c0_i32 : i32 to vector<2x16xi32>
    %81 = arith.cmpi eq, %73, %80 : vector<2x16xi32>
    %82 = vector.shape_cast %79 : vector<1x16xf32> to vector<1x16xf32>
    %83 = vector.broadcast %82 : vector<1x16xf32> to vector<2x16xf32>
    %84 = arith.select %81, %83, %74 : vector<2x16xi1>, vector<2x16xf32>
    %85 = vector.extract_strided_slice %2 {offsets = [0, 1], sizes = [16, 1], strides = [1, 1]} : vector<16x2xf32> to vector<16x1xf32>
    %86 = vector.broadcast %85 : vector<16x1xf32> to vector<16x16xf32>
    %87 = arith.mulf %64, %86 : vector<16x16xf32>
    %cst_51 = arith.constant dense<0xFF800000> : vector<16xf32>
    %88 = vector.multi_reduction <maximumf>, %87, %cst_51 [0] : vector<16x16xf32> to vector<16xf32>
    %89 = vector.shape_cast %88 : vector<16xf32> to vector<1x16xf32>
    %c1_i32 = arith.constant 1 : i32
    %90 = vector.broadcast %c1_i32 : i32 to vector<2x16xi32>
    %91 = arith.cmpi eq, %73, %90 : vector<2x16xi32>
    %92 = vector.shape_cast %89 : vector<1x16xf32> to vector<1x16xf32>
    %93 = vector.broadcast %92 : vector<1x16xf32> to vector<2x16xf32>
    %94 = arith.select %91, %93, %84 : vector<2x16xi1>, vector<2x16xf32>
    %c0_52 = arith.constant 0 : index
    %c0_53 = arith.constant 0 : index
    %95 = vector.load %arg13[%c0_52, %c0_53] : memref<2x16xf32, #tpu.memory_space<vmem>>, vector<2x16xf32>
    tpu.vector_store %arg13[%c0_52, %c0_53], %94 {strides = array<i32>} : memref<2x16xf32, #tpu.memory_space<vmem>>, vector<2x16xf32>,
    return
  }
}

module attributes {stable_mosaic.version = 11 : i64} {
  func.func @_head_kernel(%arg0: memref<2x32xf32, #tpu.memory_space<vmem>>, %arg1: memref<32x16xf32, #tpu.memory_space<vmem>>, %arg2: memref<1x16xf32, #tpu.memory_space<vmem>>, %arg3: memref<1x16xf32, #tpu.memory_space<vmem>>, %arg4: memref<1x16xf32, #tpu.memory_space<vmem>>, %arg5: memref<1x16xf32, #tpu.memory_space<vmem>>, %arg6: memref<1x16xf32, #tpu.memory_space<vmem>>, %arg7: memref<16x3xf32, #tpu.memory_space<vmem>>, %arg8: memref<1x3xf32, #tpu.memory_space<vmem>>, %arg9: memref<2x3xf32, #tpu.memory_space<vmem>>, %arg10: memref<2x16xf32, #tpu.memory_space<vmem>>) attributes {dimension_semantics = [], scalar_prefetch = 0 : i64, scratch_operands = 0 : i64, tpu.core_type = #tpu.core_type<tc>} {
    %c0 = arith.constant 0 : index
    %c0_0 = arith.constant 0 : index
    %0 = vector.load %arg0[%c0, %c0_0] : memref<2x32xf32, #tpu.memory_space<vmem>>, vector<2x32xf32>
    %c0_1 = arith.constant 0 : index
    %c0_2 = arith.constant 0 : index
    %1 = vector.load %arg1[%c0_1, %c0_2] : memref<32x16xf32, #tpu.memory_space<vmem>>, vector<32x16xf32>
    %cst = arith.constant dense<0.000000e+00> : vector<2x16xf32>
    %2 = tpu.matmul %0, %1, %cst {dimension_numbers = #tpu.dot_dimension_numbers<[1], [0], [0], [1], [0, 0, 1, 1], [], []>} : vector<2x32xf32>, vector<32x16xf32>, vector<2x16xf32> -> vector<2x16xf32>
    %c0_3 = arith.constant 0 : index
    %c0_4 = arith.constant 0 : index
    %3 = vector.load %arg2[%c0_3, %c0_4] : memref<1x16xf32, #tpu.memory_space<vmem>>, vector<1x16xf32>
    %4 = vector.broadcast %3 : vector<1x16xf32> to vector<2x16xf32>
    %5 = arith.addf %2, %4 : vector<2x16xf32>
    %cst_5 = arith.constant 0.000000e+00 : f32
    %6 = vector.broadcast %cst_5 : f32 to vector<2x16xf32>
    %7 = arith.maximumf %5, %6 : vector<2x16xf32>
    %c0_6 = arith.constant 0 : index
    %c0_7 = arith.constant 0 : index
    %8 = vector.load %arg5[%c0_6, %c0_7] : memref<1x16xf32, #tpu.memory_space<vmem>>, vector<1x16xf32>
    %9 = vector.broadcast %8 : vector<1x16xf32> to vector<2x16xf32>
    %10 = arith.subf %7, %9 : vector<2x16xf32>
    %c0_8 = arith.constant 0 : index
    %c0_9 = arith.constant 0 : index
    %11 = vector.load %arg6[%c0_8, %c0_9] : memref<1x16xf32, #tpu.memory_space<vmem>>, vector<1x16xf32>
    %cst_10 = arith.constant 9.99999974E-6 : f32
    %12 = vector.broadcast %cst_10 : f32 to vector<1x16xf32>
    %13 = arith.addf %11, %12 : vector<1x16xf32>
    %14 = math.rsqrt %13 : vector<1x16xf32>
    %15 = vector.broadcast %14 : vector<1x16xf32> to vector<2x16xf32>
    %16 = arith.mulf %10, %15 : vector<2x16xf32>
    %c0_11 = arith.constant 0 : index
    %c0_12 = arith.constant 0 : index
    %17 = vector.load %arg3[%c0_11, %c0_12] : memref<1x16xf32, #tpu.memory_space<vmem>>, vector<1x16xf32>
    %18 = vector.broadcast %17 : vector<1x16xf32> to vector<2x16xf32>
    %19 = arith.mulf %16, %18 : vector<2x16xf32>
    %c0_13 = arith.constant 0 : index
    %c0_14 = arith.constant 0 : index
    %20 = vector.load %arg4[%c0_13, %c0_14] : memref<1x16xf32, #tpu.memory_space<vmem>>, vector<1x16xf32>
    %21 = vector.broadcast %20 : vector<1x16xf32> to vector<2x16xf32>
    %22 = arith.addf %19, %21 : vector<2x16xf32>
    %c0_15 = arith.constant 0 : index
    %c0_16 = arith.constant 0 : index
    %23 = vector.load %arg10[%c0_15, %c0_16] : memref<2x16xf32, #tpu.memory_space<vmem>>, vector<2x16xf32>
    tpu.vector_store %arg10[%c0_15, %c0_16], %22 {strides = array<i32>} : memref<2x16xf32, #tpu.memory_space<vmem>>, vector<2x16xf32>,
    %c0_17 = arith.constant 0 : index
    %c0_18 = arith.constant 0 : index
    %24 = vector.load %arg7[%c0_17, %c0_18] : memref<16x3xf32, #tpu.memory_space<vmem>>, vector<16x3xf32>
    %cst_19 = arith.constant dense<0.000000e+00> : vector<2x3xf32>
    %25 = tpu.matmul %22, %24, %cst_19 {dimension_numbers = #tpu.dot_dimension_numbers<[1], [0], [0], [1], [0, 0, 1, 1], [], []>} : vector<2x16xf32>, vector<16x3xf32>, vector<2x3xf32> -> vector<2x3xf32>
    %c0_20 = arith.constant 0 : index
    %c0_21 = arith.constant 0 : index
    %26 = vector.load %arg8[%c0_20, %c0_21] : memref<1x3xf32, #tpu.memory_space<vmem>>, vector<1x3xf32>
    %27 = vector.broadcast %26 : vector<1x3xf32> to vector<2x3xf32>
    %28 = arith.addf %25, %27 : vector<2x3xf32>
    %cst_22 = arith.constant dense<0xFF800000> : vector<2xf32>
    %29 = vector.multi_reduction <maximumf>, %28, %cst_22 [1] : vector<2x3xf32> to vector<2xf32>
    %30 = vector.shape_cast %29 : vector<2xf32> to vector<2x1xf32>
    %31 = vector.broadcast %30 : vector<2x1xf32> to vector<2x3xf32>
    %32 = arith.subf %28, %31 : vector<2x3xf32>
    %33 = math.exp %32 : vector<2x3xf32>
    %cst_23 = arith.constant dense<0.000000e+00> : vector<2xf32>
    %34 = vector.multi_reduction <add>, %33, %cst_23 [1] : vector<2x3xf32> to vector<2xf32>
    %35 = vector.shape_cast %34 : vector<2xf32> to vector<2x1xf32>
    %36 = math.log %35 : vector<2x1xf32>
    %37 = vector.broadcast %36 : vector<2x1xf32> to vector<2x3xf32>
    %38 = arith.subf %32, %37 : vector<2x3xf32>
    %c0_24 = arith.constant 0 : index
    %c0_25 = arith.constant 0 : index
    %39 = vector.load %arg9[%c0_24, %c0_25] : memref<2x3xf32, #tpu.memory_space<vmem>>, vector<2x3xf32>
    tpu.vector_store %arg9[%c0_24, %c0_25], %38 {strides = array<i32>} : memref<2x3xf32, #tpu.memory_space<vmem>>, vector<2x3xf32>,
    return
  }
}

module attributes {stable_mosaic.version = 11 : i64} {
  func.func @_pooled_layer_kernel(%arg0: memref<16x4xf32, #tpu.memory_space<vmem>>, %arg1: memref<16x16xf32, #tpu.memory_space<vmem>>, %arg2: memref<4x16xf32, #tpu.memory_space<vmem>>, %arg3: memref<4x16xf32, #tpu.memory_space<vmem>>, %arg4: memref<1x16xf32, #tpu.memory_space<vmem>>, %arg5: memref<16x1xf32, #tpu.memory_space<vmem>>, %arg6: memref<16x2xf32, #tpu.memory_space<vmem>>, %arg7: memref<2x16xf32, #tpu.memory_space<vmem>>, %arg8: memref<2x1xf32, #tpu.memory_space<vmem>>, %arg9: memref<16x1xf32, #tpu.memory_space<vmem>>, %arg10: memref<16x16xf32, #tpu.memory_space<vmem>>, %arg11: memref<16x1xf32, #tpu.memory_space<vmem>>, %arg12: memref<16x1xf32, #tpu.memory_space<vmem>>, %arg13: memref<2x16xf32, #tpu.memory_space<vmem>>, %arg14: memref<2x16xf32, #tpu.memory_space<vmem>>) attributes {dimension_semantics = [], scalar_prefetch = 0 : i64, scratch_operands = 0 : i64, tpu.core_type = #tpu.core_type<tc>} {
    %c0 = arith.constant 0 : index
    %c0_0 = arith.constant 0 : index
    %0 = vector.load %arg0[%c0, %c0_0] : memref<16x4xf32, #tpu.memory_space<vmem>>, vector<16x4xf32>
    %c0_1 = arith.constant 0 : index
    %c0_2 = arith.constant 0 : index
    %1 = vector.load %arg9[%c0_1, %c0_2] : memref<16x1xf32, #tpu.memory_space<vmem>>, vector<16x1xf32>
    %c0_3 = arith.constant 0 : index
    %c0_4 = arith.constant 0 : index
    %2 = vector.load %arg6[%c0_3, %c0_4] : memref<16x2xf32, #tpu.memory_space<vmem>>, vector<16x2xf32>
    %c0_5 = arith.constant 0 : index
    %c0_6 = arith.constant 0 : index
    %3 = vector.load %arg7[%c0_5, %c0_6] : memref<2x16xf32, #tpu.memory_space<vmem>>, vector<2x16xf32>
    %c0_7 = arith.constant 0 : index
    %c0_8 = arith.constant 0 : index
    %4 = vector.load %arg1[%c0_7, %c0_8] : memref<16x16xf32, #tpu.memory_space<vmem>>, vector<16x16xf32>
    %cst = arith.constant dense<0.000000e+00> : vector<16x4xf32>
    %5 = tpu.matmul %4, %0, %cst {dimension_numbers = #tpu.dot_dimension_numbers<[1], [0], [0], [1], [0, 0, 1, 1], [], []>} : vector<16x16xf32>, vector<16x4xf32>, vector<16x4xf32> -> vector<16x4xf32>
    %c0_9 = arith.constant 0 : index
    %c0_10 = arith.constant 0 : index
    %6 = vector.load %arg2[%c0_9, %c0_10] : memref<4x16xf32, #tpu.memory_space<vmem>>, vector<4x16xf32>
    %cst_11 = arith.constant dense<0.000000e+00> : vector<16x16xf32>
    %7 = tpu.matmul %0, %6, %cst_11 {dimension_numbers = #tpu.dot_dimension_numbers<[1], [0], [0], [1], [0, 0, 1, 1], [], []>} : vector<16x4xf32>, vector<4x16xf32>, vector<16x16xf32> -> vector<16x16xf32>
    %c0_12 = arith.constant 0 : index
    %c0_13 = arith.constant 0 : index
    %8 = vector.load %arg3[%c0_12, %c0_13] : memref<4x16xf32, #tpu.memory_space<vmem>>, vector<4x16xf32>
    %cst_14 = arith.constant dense<0.000000e+00> : vector<16x16xf32>
    %9 = tpu.matmul %5, %8, %cst_14 {dimension_numbers = #tpu.dot_dimension_numbers<[1], [0], [0], [1], [0, 0, 1, 1], [], []>} : vector<16x4xf32>, vector<4x16xf32>, vector<16x16xf32> -> vector<16x16xf32>
    %10 = arith.addf %7, %9 : vector<16x16xf32>
    %c0_15 = arith.constant 0 : index
    %c0_16 = arith.constant 0 : index
    %11 = vector.load %arg4[%c0_15, %c0_16] : memref<1x16xf32, #tpu.memory_space<vmem>>, vector<1x16xf32>
    %12 = vector.broadcast %11 : vector<1x16xf32> to vector<16x16xf32>
    %13 = arith.addf %10, %12 : vector<16x16xf32>
    %cst_17 = arith.constant 0.000000e+00 : f32
    %14 = vector.broadcast %cst_17 : f32 to vector<16x16xf32>
    %15 = arith.maximumf %13, %14 : vector<16x16xf32>
    %c0_18 = arith.constant 0 : index
    %c0_19 = arith.constant 0 : index
    %16 = vector.load %arg5[%c0_18, %c0_19] : memref<16x1xf32, #tpu.memory_space<vmem>>, vector<16x1xf32>
    %cst_20 = arith.constant dense<0.000000e+00> : vector<16x1xf32>
    %17 = tpu.matmul %15, %16, %cst_20 {dimension_numbers = #tpu.dot_dimension_numbers<[1], [0], [0], [1], [0, 0, 1, 1], [], []>} : vector<16x16xf32>, vector<16x1xf32>, vector<16x1xf32> -> vector<16x1xf32>
    %18 = arith.negf %17 : vector<16x1xf32>
    %19 = math.exp %18 : vector<16x1xf32>
    %cst_21 = arith.constant 1.000000e+00 : f32
    %20 = vector.broadcast %cst_21 : f32 to vector<16x1xf32>
    %21 = arith.addf %20, %19 : vector<16x1xf32>
    %22 = arith.divf %20, %21 : vector<16x1xf32>
    %c0_22 = arith.constant 0 : index
    %c0_23 = arith.constant 0 : index
    %23 = vector.load %arg12[%c0_22, %c0_23] : memref<16x1xf32, #tpu.memory_space<vmem>>, vector<16x1xf32>
    tpu.vector_store %arg12[%c0_22, %c0_23], %22 {strides = array<i32>} : memref<16x1xf32, #tpu.memory_space<vmem>>, vector<16x1xf32>,
    %cst_24 = arith.constant 0.000000e+00 : f32
    %24 = vector.broadcast %cst_24 : f32 to vector<16x1xf32>
    %25 = arith.cmpf ogt, %1, %24 : vector<16x1xf32>
    %cst_25 = arith.constant -1.000000e+00 : f32
    %26 = vector.broadcast %cst_25 : f32 to vector<16x1xf32>
    %27 = arith.select %25, %22, %26 : vector<16x1xi1>, vector<16x1xf32>
    %28 = tpu.iota {dimensions = array<i32: 0>} : vector<16x16xi32>
    %29 = tpu.iota {dimensions = array<i32: 1>} : vector<16x16xi32>
    %cst_26 = arith.constant dense<0.000000e+00> : vector<16x16xf32>
    %30 = tpu.matmul %2, %3, %cst_26 {dimension_numbers = #tpu.dot_dimension_numbers<[1], [0], [0], [1], [0, 0, 1, 1], [], []>} : vector<16x2xf32>, vector<2x16xf32>, vector<16x16xf32> -> vector<16x16xf32>
    %31 = arith.cmpi eq, %28, %29 : vector<16x16xi32>
    %cst_27 = arith.constant 0.000000e+00 : f32
    %32 = vector.shape_cast %27 : vector<16x1xf32> to vector<16x1xf32>
    %33 = vector.broadcast %32 : vector<16x1xf32> to vector<16x16xf32>
    %34 = vector.broadcast %cst_27 : f32 to vector<16x16xf32>
    %35 = arith.select %31, %33, %34 : vector<16x16xi1>, vector<16x16xf32>
    %cst_28 = arith.constant dense<0.000000e+00> : vector<16x16xf32>
    %36 = tpu.matmul %30, %35, %cst_28 {dimension_numbers = #tpu.dot_dimension_numbers<[1], [0], [0], [1], [0, 0, 1, 1], [], []>} : vector<16x16xf32>, vector<16x16xf32>, vector<16x16xf32> -> vector<16x16xf32>
    %cst_29 = arith.constant dense<0.000000e+00> : vector<16x16xf32>
    %37 = tpu.matmul %35, %30, %cst_29 {dimension_numbers = #tpu.dot_dimension_numbers<[1], [0], [0], [1], [0, 0, 1, 1], [], []>} : vector<16x16xf32>, vector<16x16xf32>, vector<16x16xf32> -> vector<16x16xf32>
    %38 = arith.cmpf ogt, %36, %37 : vector<16x16xf32>
    %39 = arith.cmpf oeq, %36, %37 : vector<16x16xf32>
    %40 = arith.cmpi slt, %29, %28 : vector<16x16xi32>
    %41 = arith.andi %39, %40 : vector<16x16xi1>
    %42 = arith.ori %38, %41 : vector<16x16xi1>
    %cst_30 = arith.constant 0.000000e+00 : f32
    %43 = vector.broadcast %cst_30 : f32 to vector<16x16xf32>
    %44 = arith.cmpf ogt, %30, %43 : vector<16x16xf32>
    %45 = arith.andi %42, %44 : vector<16x16xi1>
    %cst_31 = arith.constant 1.000000e+00 : f32
    %cst_32 = arith.constant 0.000000e+00 : f32
    %46 = vector.broadcast %cst_31 : f32 to vector<16x16xf32>
    %47 = vector.broadcast %cst_32 : f32 to vector<16x16xf32>
    %48 = arith.select %45, %46, %47 : vector<16x16xi1>, vector<16x16xf32>
    %cst_33 = arith.constant dense<0.000000e+00> : vector<16xf32>
    %49 = vector.multi_reduction <add>, %48, %cst_33 [1] : vector<16x16xf32> to vector<16xf32>
    %50 = vector.shape_cast %49 : vector<16xf32> to vector<16x1xf32>
    %c0_34 = arith.constant 0 : index
    %c0_35 = arith.constant 0 : index
    %51 = vector.load %arg8[%c0_34, %c0_35] : memref<2x1xf32, #tpu.memory_space<vmem>>, vector<2x1xf32>
    %cst_36 = arith.constant dense<0.000000e+00> : vector<16x1xf32>
    %52 = tpu.matmul %2, %51, %cst_36 {dimension_numbers = #tpu.dot_dimension_numbers<[1], [0], [0], [1], [0, 0, 1, 1], [], []>} : vector<16x2xf32>, vector<2x1xf32>, vector<16x1xf32> -> vector<16x1xf32>
    %53 = arith.cmpf olt, %50, %52 : vector<16x1xf32>
    %cst_37 = arith.constant 0.000000e+00 : f32
    %54 = vector.broadcast %cst_37 : f32 to vector<16x1xf32>
    %55 = arith.cmpf ogt, %1, %54 : vector<16x1xf32>
    %56 = arith.andi %53, %55 : vector<16x1xi1>
    %cst_38 = arith.constant 1.000000e+00 : f32
    %cst_39 = arith.constant 0.000000e+00 : f32
    %57 = vector.broadcast %cst_38 : f32 to vector<16x1xf32>
    %58 = vector.broadcast %cst_39 : f32 to vector<16x1xf32>
    %59 = arith.select %56, %57, %58 : vector<16x1xi1>, vector<16x1xf32>
    %c0_40 = arith.constant 0 : index
    %c0_41 = arith.constant 0 : index
    %60 = vector.load %arg11[%c0_40, %c0_41] : memref<16x1xf32, #tpu.memory_space<vmem>>, vector<16x1xf32>
    tpu.vector_store %arg11[%c0_40, %c0_41], %59 {strides = array<i32>} : memref<16x1xf32, #tpu.memory_space<vmem>>, vector<16x1xf32>,
    %61 = vector.broadcast %22 : vector<16x1xf32> to vector<16x16xf32>
    %62 = arith.mulf %15, %61 : vector<16x16xf32>
    %63 = vector.broadcast %59 : vector<16x1xf32> to vector<16x16xf32>
    %64 = arith.mulf %62, %63 : vector<16x16xf32>
    %c0_42 = arith.constant 0 : index
    %c0_43 = arith.constant 0 : index
    %65 = vector.load %arg10[%c0_42, %c0_43] : memref<16x16xf32, #tpu.memory_space<vmem>>, vector<16x16xf32>
    tpu.vector_store %arg10[%c0_42, %c0_43], %64 {strides = array<i32>} : memref<16x16xf32, #tpu.memory_space<vmem>>, vector<16x16xf32>,
    %cst_44 = arith.constant dense<0.000000e+00> : vector<2x1xf32>
    %66 = tpu.matmul %3, %59, %cst_44 {dimension_numbers = #tpu.dot_dimension_numbers<[1], [0], [0], [1], [0, 0, 1, 1], [], []>} : vector<2x16xf32>, vector<16x1xf32>, vector<2x1xf32> -> vector<2x1xf32>
    %cst_45 = arith.constant 1.000000e+00 : f32
    %67 = vector.broadcast %cst_45 : f32 to vector<2x1xf32>
    %68 = arith.maximumf %66, %67 : vector<2x1xf32>
    %cst_46 = arith.constant dense<0.000000e+00> : vector<2x16xf32>
    %69 = tpu.matmul %3, %64, %cst_46 {dimension_numbers = #tpu.dot_dimension_numbers<[1], [0], [0], [1], [0, 0, 1, 1], [], []>} : vector<2x16xf32>, vector<16x16xf32>, vector<2x16xf32> -> vector<2x16xf32>
    %70 = vector.broadcast %68 : vector<2x1xf32> to vector<2x16xf32>
    %71 = arith.divf %69, %70 : vector<2x16xf32>
    %c0_47 = arith.constant 0 : index
    %c0_48 = arith.constant 0 : index
    %72 = vector.load %arg14[%c0_47, %c0_48] : memref<2x16xf32, #tpu.memory_space<vmem>>, vector<2x16xf32>
    tpu.vector_store %arg14[%c0_47, %c0_48], %71 {strides = array<i32>} : memref<2x16xf32, #tpu.memory_space<vmem>>, vector<2x16xf32>,
    %73 = tpu.iota {dimensions = array<i32: 0>} : vector<2x16xi32>
    %cst_49 = arith.constant 0.000000e+00 : f32
    %74 = vector.broadcast %cst_49 : f32 to vector<2x16xf32>
    %75 = vector.extract_strided_slice %2 {offsets = [0, 0], sizes = [16, 1], strides = [1, 1]} : vector<16x2xf32> to vector<16x1xf32>
    %76 = vector.broadcast %75 : vector<16x1xf32> to vector<16x16xf32>
    %77 = arith.mulf %64, %76 : vector<16x16xf32>
    %cst_50 = arith.constant dense<0xFF800000> : vector<16xf32>
    %78 = vector.multi_reduction <maximumf>, %77, %cst_50 [0] : vector<16x16xf32> to vector<16xf32>
    %79 = vector.shape_cast %78 : vector<16xf32> to vector<1x16xf32>
    %c0_i32 = arith.constant 0 : i32
    %80 = vector.broadcast %c0_i32 : i32 to vector<2x16xi32>
    %81 = arith.cmpi eq, %73, %80 : vector<2x16xi32>
    %82 = vector.shape_cast %79 : vector<1x16xf32> to vector<1x16xf32>
    %83 = vector.broadcast %82 : vector<1x16xf32> to vector<2x16xf32>
    %84 = arith.select %81, %83, %74 : vector<2x16xi1>, vector<2x16xf32>
    %85 = vector.extract_strided_slice %2 {offsets = [0, 1], sizes = [16, 1], strides = [1, 1]} : vector<16x2xf32> to vector<16x1xf32>
    %86 = vector.broadcast %85 : vector<16x1xf32> to vector<16x16xf32>
    %87 = arith.mulf %64, %86 : vector<16x16xf32>
    %cst_51 = arith.constant dense<0xFF800000> : vector<16xf32>
    %88 = vector.multi_reduction <maximumf>, %87, %cst_51 [0] : vector<16x16xf32> to vector<16xf32>
    %89 = vector.shape_cast %88 : vector<16xf32> to vector<1x16xf32>
    %c1_i32 = arith.constant 1 : i32
    %90 = vector.broadcast %c1_i32 : i32 to vector<2x16xi32>
    %91 = arith.cmpi eq, %73, %90 : vector<2x16xi32>
    %92 = vector.shape_cast %89 : vector<1x16xf32> to vector<1x16xf32>
    %93 = vector.broadcast %92 : vector<1x16xf32> to vector<2x16xf32>
    %94 = arith.select %91, %93, %84 : vector<2x16xi1>, vector<2x16xf32>
    %c0_52 = arith.constant 0 : index
    %c0_53 = arith.constant 0 : index
    %95 = vector.load %arg13[%c0_52, %c0_53] : memref<2x16xf32, #tpu.memory_space<vmem>>, vector<2x16xf32>
    tpu.vector_store %arg13[%c0_52, %c0_53], %94 {strides = array<i32>} : memref<2x16xf32, #tpu.memory_space<vmem>>, vector<2x16xf32>,
    return
  }
}

</mosaic_0001>

<llo_original>
// kernel: topk_forward.5
$region0: #{topk_forward.5}
  #allocation0 [shape = 'u32[]', space=smem, size = 0x4, offset = 0x4, fixed_abs, tag = 'smem constant byte address 0x4 - core index']
  #allocation1 [shape = 'u32[72,128]{1,0:T(1,128)}', space=vmem, size = 0x9000, scoped, tag = 'internal scratch']
  %s0 = inlined_call_operand.vmem [shape: f32[2,32], index: 0, kind: input, shape index: {}]
  %s1 = inlined_call_operand.vmem [shape: f32[32,16], index: 1, kind: input, shape index: {}]
  %s2 = inlined_call_operand.vmem [shape: f32[1,16], index: 2, kind: input, shape index: {}]
  %s3 = inlined_call_operand.vmem [shape: f32[1,16], index: 3, kind: input, shape index: {}]
  %s4 = inlined_call_operand.vmem [shape: f32[1,16], index: 4, kind: input, shape index: {}]
  %s5 = inlined_call_operand.vmem [shape: f32[1,16], index: 5, kind: input, shape index: {}]
  %s6 = inlined_call_operand.vmem [shape: f32[1,16], index: 6, kind: input, shape index: {}]
  %s7 = inlined_call_operand.vmem [shape: f32[16,3], index: 7, kind: input, shape index: {}]
  %s8 = inlined_call_operand.vmem [shape: f32[1,3], index: 8, kind: input, shape index: {}]
  %s9 = inlined_call_operand.hbm [shape: f32[2,3], index: 9, kind: output, shape index: {0}]
  %s10 = inlined_call_operand.hbm [shape: f32[2,16], index: 10, kind: output, shape index: {1}]
  %11 = xla_tuple %s9, %s10
  %s12 = sld [smem:[#allocation0]]
  $region54: #{topk_forward.5} parent=0
    _
  %s14 = ssub.s32 1, %s12
  %s15 = scalar_select 0, %s14, %s12
  $region1: #{topk_forward.5} parent=0
    #allocation2 [shape = 'u8[1024]{0}', space=vmem, size = 0x400, scoped, tag = 'output window, operand 0, single buffered']
    #allocation3 [shape = 's32[1]{0}', space=sflag, size = 0x4, scoped, tag = 'scoped memory for topk_forward.5']
    #allocation4 [shape = 'u8[1024]{0}', space=vmem, size = 0x400, scoped, tag = 'output window, operand 1, single buffered']
    #allocation5 [shape = 's32[1]{0}', space=sflag, size = 0x4, scoped, tag = 'scoped memory for topk_forward.5']
    %16 = vsyncpa [#allocation3], 0
    %17 = vsyncpa [#allocation5], 0
    // Predicated region
    $region2: #{topk_forward.5} parent=1 // pred_check
      _
    $region3: #{topk_forward.5} parent=1 // pred_check_branch
      %19 = sbr.rel (0) target = $region5
    $region4: #{topk_forward.5} parent=1 // pred_region
      _
    $region5: #{topk_forward.5} parent=1 // pred_fallthru
      _
    // Predicated region
    $region6: #{topk_forward.5} parent=1 // pred_check
      _
    $region7: #{topk_forward.5} parent=1 // pred_check_branch
      %21 = sbr.rel (0) target = $region9
    $region8: #{topk_forward.5} parent=1 // pred_region
      _
    $region9: #{topk_forward.5} parent=1 // pred_fallthru
      _
    // Predicated region
    $region10: #{topk_forward.5} parent=1 // pred_check
      _
    $region11: #{topk_forward.5} parent=1 // pred_check_branch
      %23 = sbr.rel (0) target = $region13
    $region12: #{topk_forward.5} parent=1 // pred_region
      _
    $region13: #{topk_forward.5} parent=1 // pred_fallthru
      _
    // Predicated region
    $region14: #{topk_forward.5} parent=1 // pred_check
      _
    $region15: #{topk_forward.5} parent=1 // pred_check_branch
      %25 = sbr.rel (0) target = $region17
    $region16: #{topk_forward.5} parent=1 // pred_region
      _
    $region17: #{topk_forward.5} parent=1 // pred_fallthru
      _
    // Predicated region
    $region18: #{topk_forward.5} parent=1 // pred_check
      _
    $region19: #{topk_forward.5} parent=1 // pred_check_branch
      %27 = sbr.rel (0) target = $region21
    $region20: #{topk_forward.5} parent=1 // pred_region
      _
    $region21: #{topk_forward.5} parent=1 // pred_fallthru
      _
    // Predicated region
    $region22: #{topk_forward.5} parent=1 // pred_check
      _
    $region23: #{topk_forward.5} parent=1 // pred_check_branch
      %29 = sbr.rel (0) target = $region25
    $region24: #{topk_forward.5} parent=1 // pred_region
      _
    $region25: #{topk_forward.5} parent=1 // pred_fallthru
      _
    // Predicated region
    $region26: #{topk_forward.5} parent=1 // pred_check
      _
    $region27: #{topk_forward.5} parent=1 // pred_check_branch
      %31 = sbr.rel (0) target = $region29
    $region28: #{topk_forward.5} parent=1 // pred_region
      _
    $region29: #{topk_forward.5} parent=1 // pred_fallthru
      _
    // Predicated region
    $region30: #{topk_forward.5} parent=1 // pred_check
      _
    $region31: #{topk_forward.5} parent=1 // pred_check_branch
      %33 = sbr.rel (0) target = $region33
    $region32: #{topk_forward.5} parent=1 // pred_region
      _
    $region33: #{topk_forward.5} parent=1 // pred_fallthru
      _
    // Predicated region
    $region34: #{topk_forward.5} parent=1 // pred_check
      _
    $region35: #{topk_forward.5} parent=1 // pred_check_branch
      %35 = sbr.rel (0) target = $region37
    $region36: #{topk_forward.5} parent=1 // pred_region
      _
    $region37: #{topk_forward.5} parent=1 // pred_fallthru
      _
    %v36 = vld [vmem:[%s0] sm:$0x3]
    %v37 = vld [vmem:[%s1] sm:$0xff]
    %v38 = vld [vmem:[%s1 + $0x8] sm:$0xff]
    %v39 = vld [vmem:[%s1 + $0x10] sm:$0xff]
    %v40 = vld [vmem:[%s1 + $0x18] sm:$0xff]
    %v41 = vld [vmem:[%s2] sm:$0x1]
    %v43 = vperm.slane %v41, 0
    %vm45 = vcmask 261120
    %v47 = vsel %vm45, %v36, 0
    %49 = vmatpush.msra.mxu0 0.0
    %50 = vmatpush.msra.mxu0 0.0
    %51 = vmatpush.msra.mxu0 0.0
    %52 = vmatpush.msra.mxu0 0.0
    %53 = vmatpush.msra.mxu0 0.0
    %54 = vmatpush.msra.mxu0 0.0
    %55 = vmatpush.msra.mxu0 0.0
    %56 = vmatpush.msra.mxu0 0.0
    %57 = vmatpush.msra.mxu0 0.0
    %58 = vmatpush.msra.mxu0 0.0
    %59 = vmatpush.msra.mxu0 0.0
    %60 = vmatpush.msra.mxu0 0.0
    %61 = vmatpush.msra.mxu0 %v40
    %62 = vmatpush.msra.mxu0 %v39
    %63 = vmatpush.msra.mxu0 %v38
    %64 = vmatpush.msra.mxu0 %v37
    %65 = vmatmul.f32.gmra.mxu0 %v47
    %v66 = vpop.f32.mrf.mxu0
    %v67 = vadd.f32 %v43, %v66
    %68 = vdwg.mxu0
    %v69 = vmax.f32 %v67, 0.0
    %v70 = vld [vmem:[%s5] sm:$0x1]
    %v72 = vperm.slane %v70, 0
    %v74 = vsub.f32 %v69, %v72
    %v75 = vld [vmem:[%s6] sm:$0x1]
    %v76 = vadd.f32 %v75, 1e-05
    %v77 = vrsqrt.pop %v76
    %v78 = vmul.f32 %v77, %v76
    %v79 = vmul.f32 %v78, %v77
    %v80 = vmul.f32 0.5, %v79
    %v81 = vsub.f32 1.5, %v80
    %v82 = vmul.f32 %v77, %v81
    %vm83 = vweird.f32 %v76
    %vm84 = vweird.f32 %v77
    %vm85 = vmor %vm83, %vm84
    %v86 = vsel %vm85, %v77, %v82
    %v88 = vperm.slane %v86, 0
    %v90 = vmul.f32 %v74, %v88
    %v91 = vld [vmem:[%s3] sm:$0x1]
    %v93 = vperm.slane %v91, 0
    %v95 = vmul.f32 %v90, %v93
    %v96 = vld [vmem:[%s4] sm:$0x1]
    %v98 = vperm.slane %v96, 0
    %v100 = vadd.f32 %v95, %v98
    %vm101 = vcmask 123904
    %102 = vst.msk [vmem:[#allocation4] sm:$0x3] %vm101, %v100
    %v103 = vld [vmem:[%s7] sm:$0xff]
    %v104 = vld [vmem:[%s7 + $0x8] sm:$0xff]
    %v105 = vld [vmem:[%s8] sm:$0x1]
    %v107 = vperm.slane %v105, 0
    %vm109 = vcmask 130048
    %v111 = vsel %vm109, %v100, 0
    %113 = vmatpush.msra.mxu0 0.0
    %114 = vmatpush.msra.mxu0 0.0
    %115 = vmatpush.msra.mxu0 0.0
    %116 = vmatpush.msra.mxu0 0.0
    %117 = vmatpush.msra.mxu0 0.0
    %118 = vmatpush.msra.mxu0 0.0
    %119 = vmatpush.msra.mxu0 0.0
    %120 = vmatpush.msra.mxu0 0.0
    %121 = vmatpush.msra.mxu0 0.0
    %122 = vmatpush.msra.mxu0 0.0
    %123 = vmatpush.msra.mxu0 0.0
    %124 = vmatpush.msra.mxu0 0.0
    %125 = vmatpush.msra.mxu0 0.0
    %126 = vmatpush.msra.mxu0 0.0
    %127 = vmatpush.msra.mxu0 %v104
    %128 = vmatpush.msra.mxu0 %v103
    %129 = vmatmul.f32.gmra.mxu0 %v111
    %v130 = vpop.f32.mrf.mxu0
    %v131 = vadd.f32 %v107, %v130
    %132 = vdwg.mxu0
    %vm133 = vcmask 17408
    %v134 = vsel %vm133, %v131, -inf
    %135 = vmax.xlane.f32.xlu0 %v134
    %v136 = vpop.xlane.xlu0 %135
    %v137 = vsub.f32 %v131, %v136
    %v138 = vmul.f32 %v137, 1.442695
    %v139 = vpow.pop %v138
    %v140 = vsel %vm133, %v139, 0.0
    %141 = vadd.xlane.f32.xlu0 %v140
    %v142 = vpop.xlane.xlu0 %141
    %v143 = vlog2.pop %v142
    %v144 = vmul.f32 %v143, 0.6931472
    %v145 = vsub.f32 %v137, %v144
    %146 = vst.msk [vmem:[#allocation2] sm:$0x3] %vm133, %v145
    // Predicated region
    $region38: #{topk_forward.5} parent=1 // pred_check
      _
    $region39: #{topk_forward.5} parent=1 // pred_check_branch
      %148 = sbr.rel (0) target = $region41
    $region40: #{topk_forward.5} parent=1 // pred_region
      %150 = vsyncadd [#allocation3], 0
      %s152 = sshll.u32 [#allocation2], 4
      %s153 = int_to_ptr.vmem [resolvable:$true] %s152
      %s154 = sshll.u32 %s9, 4
      %s155 = int_to_ptr.hbm [resolvable:$true] %s154
      %157 = dma.vmem_to_hbm [thread:$0]  %s153, 32, %s155, [#allocation3]
    $region41: #{topk_forward.5} parent=1 // pred_fallthru
      _
    // Predicated region
    $region42: #{topk_forward.5} parent=1 // pred_check
      _
    $region43: #{topk_forward.5} parent=1 // pred_check_branch
      %159 = sbr.rel (0) target = $region45
    $region44: #{topk_forward.5} parent=1 // pred_region
      %161 = vsyncadd [#allocation5], 0
      %s163 = sshll.u32 [#allocation4], 4
      %s164 = int_to_ptr.vmem [resolvable:$true] %s163
      %s165 = sshll.u32 %s10, 4
      %s166 = int_to_ptr.hbm [resolvable:$true] %s165
      %168 = dma.vmem_to_hbm [thread:$0]  %s164, 32, %s166, [#allocation5]
    $region45: #{topk_forward.5} parent=1 // pred_fallthru
      _
    // Predicated region
    $region46: #{topk_forward.5} parent=1 // pred_check
      _
    $region47: #{topk_forward.5} parent=1 // pred_check_branch
      %170 = sbr.rel (0) target = $region49
    $region48: #{topk_forward.5} parent=1 // pred_region
      %172 = dma.done [#allocation3], 32
    $region49: #{topk_forward.5} parent=1 // pred_fallthru
      _
    // Predicated region
    $region50: #{topk_forward.5} parent=1 // pred_check
      _
    $region51: #{topk_forward.5} parent=1 // pred_check_branch
      %174 = sbr.rel (0) target = $region53
    $region52: #{topk_forward.5} parent=1 // pred_region
      %176 = dma.done [#allocation5], 32
    $region53: #{topk_forward.5} parent=1 // pred_fallthru
      _
    %177 = vsyncpa [#allocation3], 1
    %178 = vsyncpa [#allocation5], 1

// kernel: topk_forward.4
$region0: #{topk_forward.4}
  #allocation0 [shape = 'u32[]', space=smem, size = 0x4, offset = 0x4, fixed_abs, tag = 'smem constant byte address 0x4 - core index']
  #allocation1 [shape = 'u32[72,128]{1,0:T(1,128)}', space=vmem, size = 0x9000, scoped, tag = 'internal scratch']
  %s0 = inlined_call_operand.vmem [shape: f32[16,16], index: 0, kind: input, shape index: {}]
  %s1 = inlined_call_operand.vmem [shape: f32[16,16], index: 1, kind: input, shape index: {}]
  %s2 = inlined_call_operand.vmem [shape: f32[16,16], index: 2, kind: input, shape index: {}]
  %s3 = inlined_call_operand.vmem [shape: f32[16,16], index: 3, kind: input, shape index: {}]
  %s4 = inlined_call_operand.vmem [shape: f32[1,16], index: 4, kind: input, shape index: {}]
  %s5 = inlined_call_operand.vmem [shape: f32[16,1], index: 5, kind: input, shape index: {}]
  %s6 = inlined_call_operand.vmem [shape: f32[16,2], index: 6, kind: input, shape index: {}]
  %s7 = inlined_call_operand.vmem [shape: f32[2,16], index: 7, kind: input, shape index: {}]
  %s8 = inlined_call_operand.vmem [shape: f32[2,1], index: 8, kind: input, shape index: {}]
  %s9 = inlined_call_operand.vmem [shape: f32[16,1], index: 9, kind: input, shape index: {}]
  %s10 = inlined_call_operand.hbm [shape: f32[16,16], index: 10, kind: output, shape index: {0}]
  %s11 = inlined_call_operand.hbm [shape: f32[16,1], index: 11, kind: output, shape index: {1}]
  %s12 = inlined_call_operand.hbm [shape: f32[16,1], index: 12, kind: output, shape index: {2}]
  %s13 = inlined_call_operand.vmem [shape: f32[2,16], index: 13, kind: output, shape index: {3}]
  %s14 = inlined_call_operand.vmem [shape: f32[2,16], index: 14, kind: output, shape index: {4}]
  %15 = xla_tuple %s10, %s11, %s12, %s13, %s14
  %s16 = sld [smem:[#allocation0]]
  $region82: #{topk_forward.4} parent=0
    _
  %s18 = ssub.s32 1, %s16
  %s19 = scalar_select 0, %s18, %s16
  $region1: #{topk_forward.4} parent=0
    #allocation2 [shape = 'u8[8192]{0}', space=vmem, size = 0x2000, scoped, tag = 'output window, operand 0, single buffered']
    #allocation3 [shape = 's32[1]{0}', space=sflag, size = 0x4, scoped, tag = 'scoped memory for topk_forward.4']
    #allocation4 [shape = 'u8[8192]{0}', space=vmem, size = 0x2000, scoped, tag = 'output window, operand 1, single buffered']
    #allocation5 [shape = 's32[1]{0}', space=sflag, size = 0x4, scoped, tag = 'scoped memory for topk_forward.4']
    #allocation6 [shape = 'u8[8192]{0}', space=vmem, size = 0x2000, scoped, tag = 'output window, operand 2, single buffered']
    %20 = vsyncpa [#allocation3], 0
    %21 = vsyncpa [#allocation5], 0
    // Predicated region
    $region2: #{topk_forward.4} parent=1 // pred_check
      _
    $region3: #{topk_forward.4} parent=1 // pred_check_branch
      %23 = sbr.rel (0) target = $region5
    $region4: #{topk_forward.4} parent=1 // pred_region
      _
    $region5: #{topk_forward.4} parent=1 // pred_fallthru
      _
    // Predicated region
    $region6: #{topk_forward.4} parent=1 // pred_check
      _
    $region7: #{topk_forward.4} parent=1 // pred_check_branch
      %25 = sbr.rel (0) target = $region9
    $region8: #{topk_forward.4} parent=1 // pred_region
      _
    $region9: #{topk_forward.4} parent=1 // pred_fallthru
      _
    // Predicated region
    $region10: #{topk_forward.4} parent=1 // pred_check
      _
    $region11: #{topk_forward.4} parent=1 // pred_check_branch
      %27 = sbr.rel (0) target = $region13
    $region12: #{topk_forward.4} parent=1 // pred_region
      _
    $region13: #{topk_forward.4} parent=1 // pred_fallthru
      _
    // Predicated region
    $region14: #{topk_forward.4} parent=1 // pred_check
      _
    $region15: #{topk_forward.4} parent=1 // pred_check_branch
      %29 = sbr.rel (0) target = $region17
    $region16: #{topk_forward.4} parent=1 // pred_region
      _
    $region17: #{topk_forward.4} parent=1 // pred_fallthru
      _
    // Predicated region
    $region18: #{topk_forward.4} parent=1 // pred_check
      _
    $region19: #{topk_forward.4} parent=1 // pred_check_branch
      %31 = sbr.rel (0) target = $region21
    $region20: #{topk_forward.4} parent=1 // pred_region
      _
    $region21: #{topk_forward.4} parent=1 // pred_fallthru
      _
    // Predicated region
    $region22: #{topk_forward.4} parent=1 // pred_check
      _
    $region23: #{topk_forward.4} parent=1 // pred_check_branch
      %33 = sbr.rel (0) target = $region25
    $region24: #{topk_forward.4} parent=1 // pred_region
      _
    $region25: #{topk_forward.4} parent=1 // pred_fallthru
      _
    // Predicated region
    $region26: #{topk_forward.4} parent=1 // pred_check
      _
    $region27: #{topk_forward.4} parent=1 // pred_check_branch
      %35 = sbr.rel (0) target = $region29
    $region28: #{topk_forward.4} parent=1 // pred_region
      _
    $region29: #{topk_forward.4} parent=1 // pred_fallthru
      _
    // Predicated region
    $region30: #{topk_forward.4} parent=1 // pred_check
      _
    $region31: #{topk_forward.4} parent=1 // pred_check_branch
      %37 = sbr.rel (0) target = $region33
    $region32: #{topk_forward.4} parent=1 // pred_region
      _
    $region33: #{topk_forward.4} parent=1 // pred_fallthru
      _
    // Predicated region
    $region34: #{topk_forward.4} parent=1 // pred_check
      _
    $region35: #{topk_forward.4} parent=1 // pred_check_branch
      %39 = sbr.rel (0) target = $region37
    $region36: #{topk_forward.4} parent=1 // pred_region
      _
    $region37: #{topk_forward.4} parent=1 // pred_fallthru
      _
    // Predicated region
    $region38: #{topk_forward.4} parent=1 // pred_check
      _
    $region39: #{topk_forward.4} parent=1 // pred_check_branch
      %41 = sbr.rel (0) target = $region41
    $region40: #{topk_forward.4} parent=1 // pred_region
      _
    $region41: #{topk_forward.4} parent=1 // pred_fallthru
      _
    %v42 = vld [vmem:[%s0] sm:$0xff]
    %v43 = vld [vmem:[%s0 + $0x8] sm:$0xff]
    %v44 = vld [vmem:[%s9] sm:$0xff]
    %v45 = vld [vmem:[%s9 + $0x8] sm:$0xff]
    %v46 = vld [vmem:[%s6] sm:$0xff]
    %v47 = vld [vmem:[%s6 + $0x8] sm:$0xff]
    %v48 = vld [vmem:[%s7] sm:$0x3]
    %v49 = vld [vmem:[%s1] sm:$0xff]
    %v50 = vld [vmem:[%s1 + $0x8] sm:$0xff]
    %vm51 = vcmask 130048
    %v53 = vsel %vm51, %v49, 0
    %v56 = vsel %vm51, %v50, 0
    %58 = vmatpush.msra.mxu0 0.0
    %59 = vmatpush.msra.mxu0 0.0
    %60 = vmatpush.msra.mxu0 0.0
    %61 = vmatpush.msra.mxu0 0.0
    %62 = vmatpush.msra.mxu0 0.0
    %63 = vmatpush.msra.mxu0 0.0
    %64 = vmatpush.msra.mxu0 0.0
    %65 = vmatpush.msra.mxu0 0.0
    %66 = vmatpush.msra.mxu0 0.0
    %67 = vmatpush.msra.mxu0 0.0
    %68 = vmatpush.msra.mxu0 0.0
    %69 = vmatpush.msra.mxu0 0.0
    %70 = vmatpush.msra.mxu0 0.0
    %71 = vmatpush.msra.mxu0 0.0
    %72 = vmatpush.msra.mxu0 %v43
    %73 = vmatpush.msra.mxu0 %v42
    %74 = vmatmul.f32.gmra.mxu0 %v53
    %v75 = vpop.f32.mrf.mxu0
    %v76 = vadd.f32 0.0, %v75
    %77 = vmatmul.f32.gmra.mxu0 %v56
    %v78 = vpop.f32.mrf.mxu0
    %v79 = vadd.f32 0.0, %v78
    %80 = vdwg.mxu0
    %v81 = vld [vmem:[%s2] sm:$0xff]
    %v82 = vld [vmem:[%s2 + $0x8] sm:$0xff]
    %v83 = vld [vmem:[%s3] sm:$0xff]
    %v84 = vld [vmem:[%s3 + $0x8] sm:$0xff]
    %v86 = vsel %vm51, %v76, 0
    %v89 = vsel %vm51, %v79, 0
    %91 = vmatpush.msra.mxu0 0.0
    %92 = vmatpush.msra.mxu0 0.0
    %93 = vmatpush.msra.mxu0 0.0
    %94 = vmatpush.msra.mxu0 0.0
    %95 = vmatpush.msra.mxu0 0.0
    %96 = vmatpush.msra.mxu0 0.0
    %97 = vmatpush.msra.mxu0 0.0
    %98 = vmatpush.msra.mxu0 0.0
    %99 = vmatpush.msra.mxu0 0.0
    %100 = vmatpush.msra.mxu0 0.0
    %101 = vmatpush.msra.mxu0 0.0
    %102 = vmatpush.msra.mxu0 0.0
    %103 = vmatpush.msra.mxu0 0.0
    %104 = vmatpush.msra.mxu0 0.0
    %105 = vmatpush.msra.mxu0 %v84
    %106 = vmatpush.msra.mxu0 %v83
    %107 = vmatmul.f32.gmra.mxu0 %v86
    %v108 = vpop.f32.mrf.mxu0
    %v109 = vadd.f32 0.0, %v108
    %110 = vmatmul.f32.gmra.mxu0 %v89
    %v111 = vpop.f32.mrf.mxu0
    %v112 = vadd.f32 0.0, %v111
    %113 = vdwg.mxu0
    %v115 = vsel %vm51, %v42, 0
    %v118 = vsel %vm51, %v43, 0
    %120 = vmatpush.msra.mxu0 0.0
    %121 = vmatpush.msra.mxu0 0.0
    %122 = vmatpush.msra.mxu0 0.0
    %123 = vmatpush.msra.mxu0 0.0
    %124 = vmatpush.msra.mxu0 0.0
    %125 = vmatpush.msra.mxu0 0.0
    %126 = vmatpush.msra.mxu0 0.0
    %127 = vmatpush.msra.mxu0 0.0
    %128 = vmatpush.msra.mxu0 0.0
    %129 = vmatpush.msra.mxu0 0.0
    %130 = vmatpush.msra.mxu0 0.0
    %131 = vmatpush.msra.mxu0 0.0
    %132 = vmatpush.msra.mxu0 0.0
    %133 = vmatpush.msra.mxu0 0.0
    %134 = vmatpush.msra.mxu0 %v82
    %135 = vmatpush.msra.mxu0 %v81
    %136 = vmatmul.f32.gmra.mxu0 %v115
    %v137 = vpop.f32.mrf.mxu0
    %v138 = vadd.f32 %v109, %v137
    %139 = vmatmul.f32.gmra.mxu0 %v118
    %v140 = vpop.f32.mrf.mxu0
    %v141 = vadd.f32 %v112, %v140
    %142 = vdwg.mxu0
    %v143 = vld [vmem:[%s4] sm:$0x1]
    %v145 = vperm.slane %v143, 0
    %v147 = vadd.f32 %v138, %v145
    %v148 = vadd.f32 %v141, %v145
    %v149 = vmax.f32 %v147, 0.0
    %v150 = vmax.f32 %v148, 0.0
    %v151 = vld [vmem:[%s5] sm:$0xff]
    %v152 = vld [vmem:[%s5 + $0x8] sm:$0xff]
    %v154 = vsel %vm51, %v149, 0
    %v157 = vsel %vm51, %v150, 0
    %159 = vmatpush.msra.mxu0 0.0
    %160 = vmatpush.msra.mxu0 0.0
    %161 = vmatpush.msra.mxu0 0.0
    %162 = vmatpush.msra.mxu0 0.0
    %163 = vmatpush.msra.mxu0 0.0
    %164 = vmatpush.msra.mxu0 0.0
    %165 = vmatpush.msra.mxu0 0.0
    %166 = vmatpush.msra.mxu0 0.0
    %167 = vmatpush.msra.mxu0 0.0
    %168 = vmatpush.msra.mxu0 0.0
    %169 = vmatpush.msra.mxu0 0.0
    %170 = vmatpush.msra.mxu0 0.0
    %171 = vmatpush.msra.mxu0 0.0
    %172 = vmatpush.msra.mxu0 0.0
    %173 = vmatpush.msra.mxu0 %v152
    %174 = vmatpush.msra.mxu0 %v151
    %175 = vmatmul.f32.gmra.mxu0 %v154
    %v176 = vpop.f32.mrf.mxu0
    %v177 = vadd.f32 0.0, %v176
    %178 = vmatmul.f32.gmra.mxu0 %v157
    %v179 = vpop.f32.mrf.mxu0
    %v180 = vadd.f32 0.0, %v179
    %181 = vdwg.mxu0
    %v182 = vxor.u32 %v177, 2147483648
    %v183 = vxor.u32 %v180, 2147483648
    %v184 = vmul.f32 %v182, 1.442695
    %v185 = vpow.pop %v184
    %v186 = vmul.f32 %v183, 1.442695
    %v187 = vpow.pop %v186
    %v188 = vadd.f32 %v185, 1.0
    %v189 = vadd.f32 %v187, 1.0
    %v190 = vrcp.pop %v188
    %v191 = vmul.f32 %v188, %v190
    %v192 = vsub.f32 1.0, %v191
    %v193 = vmul.f32 %v190, %v192
    %v194 = vadd.f32 %v190, %v193
    %vm195 = vweird.f32 %v188
    %vm196 = vweird.f32 %v190
    %vm197 = vmor %vm195, %vm196
    %v198 = vsel %vm197, %v190, %v194
    %v199 = vand.u32 2147483647, %v188
    %vm200 = vcmp.eq.f32.partialorder %v199, 8.507059e+37
    %v201 = vand.u32 %v188, 2147483648
    %v202 = vor.u32 1.1754944e-38, %v201
    %v203 = vsel %vm200, %v202, %v198
    %v204 = vmul.f32 1.0, %v203
    %v205 = vrcp.pop %v189
    %v206 = vmul.f32 %v189, %v205
    %v207 = vsub.f32 1.0, %v206
    %v208 = vmul.f32 %v205, %v207
    %v209 = vadd.f32 %v205, %v208
    %vm210 = vweird.f32 %v189
    %vm211 = vweird.f32 %v205
    %vm212 = vmor %vm210, %vm211
    %v213 = vsel %vm212, %v205, %v209
    %v214 = vand.u32 2147483647, %v189
    %vm215 = vcmp.eq.f32.partialorder %v214, 8.507059e+37
    %v216 = vand.u32 %v189, 2147483648
    %v217 = vor.u32 1.1754944e-38, %v216
    %v218 = vsel %vm215, %v217, %v213
    %v219 = vmul.f32 1.0, %v218
    %vm220 = vcmask 7168
    %221 = vst.msk [vmem:[#allocation6] sm:$0xff] %vm220, %v204
    %222 = vst.msk [vmem:[#allocation6 + $0x8] sm:$0xff] %vm220, %v219
    %vm223 = vcmp.gt.f32.partialorder %v44, 0.0
    %vm224 = vcmp.gt.f32.partialorder %v45, 0.0
    %v225 = vsel %vm223, %v204, -1.0
    %v226 = vsel %vm224, %v219, -1.0
    %v227 = vlaneseq
    %v228 = vshrl.u32 %v227, 7
    %v229 = vadd.s32 %v228, 8
    %v230 = vlaneseq
    %v231 = vand.u32 %v230, 127
    %vm232 = vcmask 15360
    %v234 = vsel %vm232, %v46, 0
    %v237 = vsel %vm232, %v47, 0
    %vm239 = vcmask 1041408
    %v241 = vsel %vm239, %v48, 0
    %243 = vmatpush.msra.mxu0 0.0
    %244 = vmatpush.msra.mxu0 0.0
    %245 = vmatpush.msra.mxu0 0.0
    %246 = vmatpush.msra.mxu0 0.0
    %247 = vmatpush.msra.mxu0 0.0
    %248 = vmatpush.msra.mxu0 0.0
    %249 = vmatpush.msra.mxu0 0.0
    %250 = vmatpush.msra.mxu0 0.0
    %251 = vmatpush.msra.mxu0 0.0
    %252 = vmatpush.msra.mxu0 0.0
    %253 = vmatpush.msra.mxu0 0.0
    %254 = vmatpush.msra.mxu0 0.0
    %255 = vmatpush.msra.mxu0 0.0
    %256 = vmatpush.msra.mxu0 0.0
    %257 = vmatpush.msra.mxu0 0.0
    %258 = vmatpush.msra.mxu0 %v241
    %259 = vmatmul.f32.gmra.mxu0 %v234
    %v260 = vpop.f32.mrf.mxu0
    %v261 = vadd.f32 0.0, %v260
    %262 = vmatmul.f32.gmra.mxu0 %v237
    %v263 = vpop.f32.mrf.mxu0
    %v264 = vadd.f32 0.0, %v263
    %265 = vdwg.mxu0
    %vm266 = vcmp.eq.s32.totalorder %v228, %v231
    %vm267 = vcmp.eq.s32.totalorder %v229, %v231
    %269 = vset.pattern.permute.xlu0 0
    %270 = vperm.xlu0 %269, %v225
    %v271 = vpop.permute.xlu0 %270
    %274 = vset.pattern.permute.xlu0 0
    %275 = vperm.xlu0 %274, %v226
    %v276 = vpop.permute.xlu0 %275
    %v278 = vsel %vm266, %v271, 0.0
    %v279 = vsel %vm267, %v276, 0.0
    %v281 = vsel %vm51, %v261, 0
    %v284 = vsel %vm51, %v264, 0
    %286 = vmatpush.msra.mxu0 0.0
    %287 = vmatpush.msra.mxu0 0.0
    %288 = vmatpush.msra.mxu0 0.0
    %289 = vmatpush.msra.mxu0 0.0
    %290 = vmatpush.msra.mxu0 0.0
    %291 = vmatpush.msra.mxu0 0.0
    %292 = vmatpush.msra.mxu0 0.0
    %293 = vmatpush.msra.mxu0 0.0
    %294 = vmatpush.msra.mxu0 0.0
    %295 = vmatpush.msra.mxu0 0.0
    %296 = vmatpush.msra.mxu0 0.0
    %297 = vmatpush.msra.mxu0 0.0
    %298 = vmatpush.msra.mxu0 0.0
    %299 = vmatpush.msra.mxu0 0.0
    %300 = vmatpush.msra.mxu0 %v279
    %301 = vmatpush.msra.mxu0 %v278
    %302 = vmatmul.f32.gmra.mxu0 %v281
    %v303 = vpop.f32.mrf.mxu0
    %v304 = vadd.f32 0.0, %v303
    %305 = vmatmul.f32.gmra.mxu0 %v284
    %v306 = vpop.f32.mrf.mxu0
    %v307 = vadd.f32 0.0, %v306
    %308 = vdwg.mxu0
    %v310 = vsel %vm51, %v278, 0
    %v313 = vsel %vm51, %v279, 0
    %315 = vmatpush.msra.mxu0 0.0
    %316 = vmatpush.msra.mxu0 0.0
    %317 = vmatpush.msra.mxu0 0.0
    %318 = vmatpush.msra.mxu0 0.0
    %319 = vmatpush.msra.mxu0 0.0
    %320 = vmatpush.msra.mxu0 0.0
    %321 = vmatpush.msra.mxu0 0.0
    %322 = vmatpush.msra.mxu0 0.0
    %323 = vmatpush.msra.mxu0 0.0
    %324 = vmatpush.msra.mxu0 0.0
    %325 = vmatpush.msra.mxu0 0.0
    %326 = vmatpush.msra.mxu0 0.0
    %327 = vmatpush.msra.mxu0 0.0
    %328 = vmatpush.msra.mxu0 0.0
    %329 = vmatpush.msra.mxu0 %v264
    %330 = vmatpush.msra.mxu0 %v261
    %331 = vmatmul.f32.gmra.mxu0 %v310
    %v332 = vpop.f32.mrf.mxu0
    %v333 = vadd.f32 0.0, %v332
    %334 = vmatmul.f32.gmra.mxu0 %v313
    %v335 = vpop.f32.mrf.mxu0
    %v336 = vadd.f32 0.0, %v335
    %337 = vdwg.mxu0
    %vm338 = vcmp.gt.f32.partialorder %v304, %v333
    %vm339 = vcmp.gt.f32.partialorder %v307, %v336
    %vm340 = vcmp.eq.f32.partialorder %v304, %v333
    %vm341 = vcmp.eq.f32.partialorder %v307, %v336
    %vm342 = vcmp.lt.s32.totalorder %v231, %v228
    %vm343 = vcmp.lt.s32.totalorder %v231, %v229
    %vm344 = vmand %vm340, %vm342
    %vm345 = vmand %vm341, %vm343
    %vm346 = vmor %vm338, %vm344
    %vm347 = vmor %vm339, %vm345
    %vm348 = vcmp.gt.f32.partialorder %v261, 0.0
    %vm349 = vcmp.gt.f32.partialorder %v264, 0.0
    %vm350 = vmand %vm346, %vm348
    %vm351 = vmand %vm347, %vm349
    %v352 = vsel %vm350, 1.0, 0.0
    %v353 = vsel %vm351, 1.0, 0.0
    %v354 = vsel %vm51, %v352, 0.0
    %355 = vadd.xlane.f32.xlu0 %v354
    %v356 = vpop.xlane.xlu0 %355
    %v357 = vsel %vm51, %v353, 0.0
    %358 = vadd.xlane.f32.xlu0 %v357
    %v359 = vpop.xlane.xlu0 %358
    %v360 = vld [vmem:[%s8] sm:$0x3]
    %v362 = vsel %vm239, %v360, 0
    %364 = vmatpush.msra.mxu0 0.0
    %365 = vmatpush.msra.mxu0 0.0
    %366 = vmatpush.msra.mxu0 0.0
    %367 = vmatpush.msra.mxu0 0.0
    %368 = vmatpush.msra.mxu0 0.0
    %369 = vmatpush.msra.mxu0 0.0
    %370 = vmatpush.msra.mxu0 0.0
    %371 = vmatpush.msra.mxu0 0.0
    %372 = vmatpush.msra.mxu0 0.0
    %373 = vmatpush.msra.mxu0 0.0
    %374 = vmatpush.msra.mxu0 0.0
    %375 = vmatpush.msra.mxu0 0.0
    %376 = vmatpush.msra.mxu0 0.0
    %377 = vmatpush.msra.mxu0 0.0
    %378 = vmatpush.msra.mxu0 0.0
    %379 = vmatpush.msra.mxu0 %v362
    %380 = vmatmul.f32.gmra.mxu0 %v234
    %v381 = vpop.f32.mrf.mxu0
    %v382 = vadd.f32 0.0, %v381
    %383 = vmatmul.f32.gmra.mxu0 %v237
    %v384 = vpop.f32.mrf.mxu0
    %v385 = vadd.f32 0.0, %v384
    %386 = vdwg.mxu0
    %vm387 = vcmp.lt.f32.partialorder %v356, %v382
    %vm388 = vcmp.lt.f32.partialorder %v359, %v385
    %vm389 = vmand %vm387, %vm223
    %vm390 = vmand %vm388, %vm224
    %v391 = vsel %vm389, 1.0, 0.0
    %v392 = vsel %vm390, 1.0, 0.0
    %393 = vst.msk [vmem:[#allocation4] sm:$0xff] %vm220, %v391
    %394 = vst.msk [vmem:[#allocation4 + $0x8] sm:$0xff] %vm220, %v392
    %396 = vset.pattern.permute.xlu0 0
    %397 = vperm.xlu0 %396, %v204
    %v398 = vpop.permute.xlu0 %397
    %401 = vset.pattern.permute.xlu0 0
    %402 = vperm.xlu0 %401, %v219
    %v403 = vpop.permute.xlu0 %402
    %v405 = vmul.f32 %v149, %v398
    %v406 = vmul.f32 %v150, %v403
    %408 = vset.pattern.permute.xlu0 0
    %409 = vperm.xlu0 %408, %v391
    %v410 = vpop.permute.xlu0 %409
    %413 = vset.pattern.permute.xlu0 0
    %414 = vperm.xlu0 %413, %v392
    %v415 = vpop.permute.xlu0 %414
    %v417 = vmul.f32 %v405, %v410
    %v418 = vmul.f32 %v406, %v415
    %419 = vst.msk [vmem:[#allocation2] sm:$0xff] %vm51, %v417
    %420 = vst.msk [vmem:[#allocation2 + $0x8] sm:$0xff] %vm51, %v418
    %v421 = vsel %vm51, %v48, 0
    %423 = vmatpush.msra.mxu0 0.0
    %424 = vmatpush.msra.mxu0 0.0
    %425 = vmatpush.msra.mxu0 0.0
    %426 = vmatpush.msra.mxu0 0.0
    %427 = vmatpush.msra.mxu0 0.0
    %428 = vmatpush.msra.mxu0 0.0
    %429 = vmatpush.msra.mxu0 0.0
    %430 = vmatpush.msra.mxu0 0.0
    %431 = vmatpush.msra.mxu0 0.0
    %432 = vmatpush.msra.mxu0 0.0
    %433 = vmatpush.msra.mxu0 0.0
    %434 = vmatpush.msra.mxu0 0.0
    %435 = vmatpush.msra.mxu0 0.0
    %436 = vmatpush.msra.mxu0 0.0
    %437 = vmatpush.msra.mxu0 %v392
    %438 = vmatpush.msra.mxu0 %v391
    %439 = vmatmul.f32.gmra.mxu0 %v421
    %v440 = vpop.f32.mrf.mxu0
    %v441 = vadd.f32 0.0, %v440
    %442 = vdwg.mxu0
    %v443 = vmax.f32 %v441, 1.0
    %444 = vmatpush.msra.mxu0 0.0
    %445 = vmatpush.msra.mxu0 0.0
    %446 = vmatpush.msra.mxu0 0.0
    %447 = vmatpush.msra.mxu0 0.0
    %448 = vmatpush.msra.mxu0 0.0
    %449 = vmatpush.msra.mxu0 0.0
    %450 = vmatpush.msra.mxu0 0.0
    %451 = vmatpush.msra.mxu0 0.0
    %452 = vmatpush.msra.mxu0 0.0
    %453 = vmatpush.msra.mxu0 0.0
    %454 = vmatpush.msra.mxu0 0.0
    %455 = vmatpush.msra.mxu0 0.0
    %456 = vmatpush.msra.mxu0 0.0
    %457 = vmatpush.msra.mxu0 0.0
    %458 = vmatpush.msra.mxu0 %v418
    %459 = vmatpush.msra.mxu0 %v417
    %460 = vmatmul.f32.gmra.mxu0 %v421
    %v461 = vpop.f32.mrf.mxu0
    %v462 = vadd.f32 0.0, %v461
    %463 = vdwg.mxu0
    %465 = vset.pattern.permute.xlu0 0
    %466 = vperm.xlu0 %465, %v443
    %v467 = vpop.permute.xlu0 %466
    %v469 = vrcp.pop %v467
    %v470 = vmul.f32 %v467, %v469
    %v471 = vsub.f32 1.0, %v470
    %v472 = vmul.f32 %v469, %v471
    %v473 = vadd.f32 %v469, %v472
    %vm474 = vweird.f32 %v467
    %vm475 = vweird.f32 %v469
    %vm476 = vmor %vm474, %vm475
    %v477 = vsel %vm476, %v469, %v473
    %v478 = vand.u32 2147483647, %v467
    %vm479 = vcmp.eq.f32.partialorder %v478, 8.507059e+37
    %v480 = vand.u32 %v467, 2147483648
    %v481 = vor.u32 1.1754944e-38, %v480
    %v482 = vsel %vm479, %v481, %v477
    %v483 = vmul.f32 %v462, %v482
    %vm484 = vcmask 123904
    %485 = vst.msk [vmem:[%s14] sm:$0x3] %vm484, %v483
    %486 = vset.pattern.permute.xlu0 0
    %487 = vperm.xlu0 %486, %v46
    %v488 = vpop.permute.xlu0 %487
    %490 = vset.pattern.permute.xlu0 0
    %491 = vperm.xlu0 %490, %v47
    %v492 = vpop.permute.xlu0 %491
    %v494 = vmul.f32 %v417, %v488
    %v495 = vmul.f32 %v418, %v492
    %v496 = vsel %vm51, %v494, -inf
    %v497 = vsel %vm51, %v495, -inf
    %v498 = vmax.f32 %v496, %v497
    %v499 = vrot.slane %v498, 4
    %v500 = vmax.f32 %v498, %v499
    %v501 = vrot.slane %v500, 2
    %v502 = vmax.f32 %v500, %v501
    %v503 = vrot.slane %v502, 1
    %v504 = vmax.f32 %v502, %v503
    %vm505 = vcmp.eq.s32.totalorder %v228, 0
    %v506 = vsel %vm505, %v504, 0.0
    %507 = vset.pattern.permute.xlu0 1
    %508 = vperm.xlu0 %507, %v46
    %v509 = vpop.permute.xlu0 %508
    %511 = vset.pattern.permute.xlu0 1
    %512 = vperm.xlu0 %511, %v47
    %v513 = vpop.permute.xlu0 %512
    %v515 = vmul.f32 %v417, %v509
    %v516 = vmul.f32 %v418, %v513
    %v517 = vsel %vm51, %v515, -inf
    %v518 = vsel %vm51, %v516, -inf
    %v519 = vmax.f32 %v517, %v518
    %v520 = vrot.slane %v519, 4
    %v521 = vmax.f32 %v519, %v520
    %v522 = vrot.slane %v521, 2
    %v523 = vmax.f32 %v521, %v522
    %v524 = vrot.slane %v523, 1
    %v525 = vmax.f32 %v523, %v524
    %vm526 = vcmp.eq.s32.totalorder %v228, 1
    %v527 = vsel %vm526, %v525, %v506
    %528 = vst.msk [vmem:[%s13] sm:$0x3] %vm484, %v527
    // Predicated region
    $region42: #{topk_forward.4} parent=1 // pred_check
      _
    $region43: #{topk_forward.4} parent=1 // pred_check_branch
      %530 = sbr.rel (0) target = $region45
    $region44: #{topk_forward.4} parent=1 // pred_region
      %532 = vsyncadd [#allocation3], 0
      %s533 = sshll.u32 [#allocation2], 4
      %s534 = int_to_ptr.vmem [resolvable:$true] %s533
      %s535 = sshll.u32 %s10, 4
      %s536 = int_to_ptr.hbm [resolvable:$true] %s535
      %541 = dma.vmem_to_hbm [thread:$0]  %s534, 256, %s536, [#allocation3], 128, 128, 8
    $region45: #{topk_forward.4} parent=1 // pred_fallthru
      _
    // Predicated region
    $region46: #{topk_forward.4} parent=1 // pred_check
      _
    $region47: #{topk_forward.4} parent=1 // pred_check_branch
      %543 = sbr.rel (0) target = $region49
    $region48: #{topk_forward.4} parent=1 // pred_region
      %545 = vsyncadd [#allocation5], 0
      %s546 = sshll.u32 [#allocation4], 4
      %s547 = int_to_ptr.vmem [resolvable:$true] %s546
      %s548 = sshll.u32 %s11, 4
      %s549 = int_to_ptr.hbm [resolvable:$true] %s548
      %554 = dma.vmem_to_hbm [thread:$0]  %s547, 256, %s549, [#allocation5], 128, 128, 8
    $region49: #{topk_forward.4} parent=1 // pred_fallthru
      _
    // Predicated region
    $region50: #{topk_forward.4} parent=1 // pred_check
      _
    $region51: #{topk_forward.4} parent=1 // pred_check_branch
      %556 = sbr.rel (0) target = $region53
    $region52: #{topk_forward.4} parent=1 // pred_region
      %558 = vsyncadd [#allocation5], 0
      %s559 = sshll.u32 [#allocation6], 4
      %s560 = int_to_ptr.vmem [resolvable:$true] %s559
      %s561 = sshll.u32 %s12, 4
      %s562 = int_to_ptr.hbm [resolvable:$true] %s561
      %567 = dma.vmem_to_hbm [thread:$0]  %s560, 256, %s562, [#allocation5], 128, 128, 8
    $region53: #{topk_forward.4} parent=1 // pred_fallthru
      _
    // Predicated region
    $region54: #{topk_forward.4} parent=1 // pred_check
      _
    $region55: #{topk_forward.4} parent=1 // pred_check_branch
      %569 = sbr.rel (0) target = $region57
    $region56: #{topk_forward.4} parent=1 // pred_region
      _
    $region57: #{topk_forward.4} parent=1 // pred_fallthru
      _
    // Predicated region
    $region58: #{topk_forward.4} parent=1 // pred_check
      _
    $region59: #{topk_forward.4} parent=1 // pred_check_branch
      %571 = sbr.rel (0) target = $region61
    $region60: #{topk_forward.4} parent=1 // pred_region
      _
    $region61: #{topk_forward.4} parent=1 // pred_fallthru
      _
    // Predicated region
    $region62: #{topk_forward.4} parent=1 // pred_check
      _
    $region63: #{topk_forward.4} parent=1 // pred_check_branch
      %573 = sbr.rel (0) target = $region65
    $region64: #{topk_forward.4} parent=1 // pred_region
      %575 = dma.done [#allocation3], 256
    $region65: #{topk_forward.4} parent=1 // pred_fallthru
      _
    // Predicated region
    $region66: #{topk_forward.4} parent=1 // pred_check
      _
    $region67: #{topk_forward.4} parent=1 // pred_check_branch
      %577 = sbr.rel (0) target = $region69
    $region68: #{topk_forward.4} parent=1 // pred_region
      %579 = dma.done [#allocation5], 256
    $region69: #{topk_forward.4} parent=1 // pred_fallthru
      _
    // Predicated region
    $region70: #{topk_forward.4} parent=1 // pred_check
      _
    $region71: #{topk_forward.4} parent=1 // pred_check_branch
      %581 = sbr.rel (0) target = $region73
    $region72: #{topk_forward.4} parent=1 // pred_region
      %583 = dma.done [#allocation5], 256
    $region73: #{topk_forward.4} parent=1 // pred_fallthru
      _
    // Predicated region
    $region74: #{topk_forward.4} parent=1 // pred_check
      _
    $region75: #{topk_forward.4} parent=1 // pred_check_branch
      %585 = sbr.rel (0) target = $region77
    $region76: #{topk_forward.4} parent=1 // pred_region
      _
    $region77: #{topk_forward.4} parent=1 // pred_fallthru
      _
    // Predicated region
    $region78: #{topk_forward.4} parent=1 // pred_check
      _
    $region79: #{topk_forward.4} parent=1 // pred_check_branch
      %587 = sbr.rel (0) target = $region81
    $region80: #{topk_forward.4} parent=1 // pred_region
      _
    $region81: #{topk_forward.4} parent=1 // pred_fallthru
      _
    %588 = vsyncpa [#allocation3], 1
    %589 = vsyncpa [#allocation5], 1

// kernel: topk_forward.3
$region0: #{topk_forward.3}
  #allocation0 [shape = 'u32[]', space=smem, size = 0x4, offset = 0x4, fixed_abs, tag = 'smem constant byte address 0x4 - core index']
  #allocation1 [shape = 'u32[72,128]{1,0:T(1,128)}', space=vmem, size = 0x9000, scoped, tag = 'internal scratch']
  %s0 = inlined_call_operand.vmem [shape: f32[16,4], index: 0, kind: input, shape index: {}]
  %s1 = inlined_call_operand.vmem [shape: f32[16,16], index: 1, kind: input, shape index: {}]
  %s2 = inlined_call_operand.vmem [shape: f32[4,16], index: 2, kind: input, shape index: {}]
  %s3 = inlined_call_operand.vmem [shape: f32[4,16], index: 3, kind: input, shape index: {}]
  %s4 = inlined_call_operand.vmem [shape: f32[1,16], index: 4, kind: input, shape index: {}]
  %s5 = inlined_call_operand.vmem [shape: f32[16,1], index: 5, kind: input, shape index: {}]
  %s6 = inlined_call_operand.vmem [shape: f32[16,2], index: 6, kind: input, shape index: {}]
  %s7 = inlined_call_operand.vmem [shape: f32[2,16], index: 7, kind: input, shape index: {}]
  %s8 = inlined_call_operand.vmem [shape: f32[2,1], index: 8, kind: input, shape index: {}]
  %s9 = inlined_call_operand.vmem [shape: f32[16,1], index: 9, kind: input, shape index: {}]
  %s10 = inlined_call_operand.vmem [shape: f32[16,16], index: 10, kind: output, shape index: {0}]
  %s11 = inlined_call_operand.vmem [shape: f32[16,1], index: 11, kind: output, shape index: {1}]
  %s12 = inlined_call_operand.vmem [shape: f32[16,1], index: 12, kind: output, shape index: {2}]
  %s13 = inlined_call_operand.vmem [shape: f32[2,16], index: 13, kind: output, shape index: {3}]
  %s14 = inlined_call_operand.vmem [shape: f32[2,16], index: 14, kind: output, shape index: {4}]
  %15 = xla_tuple %s10, %s11, %s12, %s13, %s14
  %s16 = sld [smem:[#allocation0]]
  $region82: #{topk_forward.3} parent=0
    _
  %s18 = ssub.s32 1, %s16
  %s19 = scalar_select 0, %s18, %s16
  // Predicated region
  $region2: #{topk_forward.3} parent=0 // pred_check
    _
  $region3: #{topk_forward.3} parent=0 // pred_check_branch
    %21 = sbr.rel (0) target = $region5
  $region4: #{topk_forward.3} parent=0 // pred_region
    _
  $region5: #{topk_forward.3} parent=0 // pred_fallthru
    _
  // Predicated region
  $region6: #{topk_forward.3} parent=0 // pred_check
    _
  $region7: #{topk_forward.3} parent=0 // pred_check_branch
    %23 = sbr.rel (0) target = $region9
  $region8: #{topk_forward.3} parent=0 // pred_region
    _
  $region9: #{topk_forward.3} parent=0 // pred_fallthru
    _
  // Predicated region
  $region10: #{topk_forward.3} parent=0 // pred_check
    _
  $region11: #{topk_forward.3} parent=0 // pred_check_branch
    %25 = sbr.rel (0) target = $region13
  $region12: #{topk_forward.3} parent=0 // pred_region
    _
  $region13: #{topk_forward.3} parent=0 // pred_fallthru
    _
  // Predicated region
  $region14: #{topk_forward.3} parent=0 // pred_check
    _
  $region15: #{topk_forward.3} parent=0 // pred_check_branch
    %27 = sbr.rel (0) target = $region17
  $region16: #{topk_forward.3} parent=0 // pred_region
    _
  $region17: #{topk_forward.3} parent=0 // pred_fallthru
    _
  // Predicated region
  $region18: #{topk_forward.3} parent=0 // pred_check
    _
  $region19: #{topk_forward.3} parent=0 // pred_check_branch
    %29 = sbr.rel (0) target = $region21
  $region20: #{topk_forward.3} parent=0 // pred_region
    _
  $region21: #{topk_forward.3} parent=0 // pred_fallthru
    _
  // Predicated region
  $region22: #{topk_forward.3} parent=0 // pred_check
    _
  $region23: #{topk_forward.3} parent=0 // pred_check_branch
    %31 = sbr.rel (0) target = $region25
  $region24: #{topk_forward.3} parent=0 // pred_region
    _
  $region25: #{topk_forward.3} parent=0 // pred_fallthru
    _
  // Predicated region
  $region26: #{topk_forward.3} parent=0 // pred_check
    _
  $region27: #{topk_forward.3} parent=0 // pred_check_branch
    %33 = sbr.rel (0) target = $region29
  $region28: #{topk_forward.3} parent=0 // pred_region
    _
  $region29: #{topk_forward.3} parent=0 // pred_fallthru
    _
  // Predicated region
  $region30: #{topk_forward.3} parent=0 // pred_check
    _
  $region31: #{topk_forward.3} parent=0 // pred_check_branch
    %35 = sbr.rel (0) target = $region33
  $region32: #{topk_forward.3} parent=0 // pred_region
    _
  $region33: #{topk_forward.3} parent=0 // pred_fallthru
    _
  // Predicated region
  $region34: #{topk_forward.3} parent=0 // pred_check
    _
  $region35: #{topk_forward.3} parent=0 // pred_check_branch
    %37 = sbr.rel (0) target = $region37
  $region36: #{topk_forward.3} parent=0 // pred_region
    _
  $region37: #{topk_forward.3} parent=0 // pred_fallthru
    _
  // Predicated region
  $region38: #{topk_forward.3} parent=0 // pred_check
    _
  $region39: #{topk_forward.3} parent=0 // pred_check_branch
    %39 = sbr.rel (0) target = $region41
  $region40: #{topk_forward.3} parent=0 // pred_region
    _
  $region41: #{topk_forward.3} parent=0 // pred_fallthru
    _
  %v40 = vld [vmem:[%s0] sm:$0xff]
  %v41 = vld [vmem:[%s0 + $0x8] sm:$0xff]
  %v42 = vld [vmem:[%s9] sm:$0xff]
  %v43 = vld [vmem:[%s9 + $0x8] sm:$0xff]
  %v44 = vld [vmem:[%s6] sm:$0xff]
  %v45 = vld [vmem:[%s6 + $0x8] sm:$0xff]
  %v46 = vld [vmem:[%s7] sm:$0x3]
  %v47 = vld [vmem:[%s1] sm:$0xff]
  %v48 = vld [vmem:[%s1 + $0x8] sm:$0xff]
  %vm49 = vcmask 130048
  %v51 = vsel %vm49, %v47, 0
  %v54 = vsel %vm49, %v48, 0
  %56 = vmatpush.msra.mxu0 0.0
  %57 = vmatpush.msra.mxu0 0.0
  %58 = vmatpush.msra.mxu0 0.0
  %59 = vmatpush.msra.mxu0 0.0
  %60 = vmatpush.msra.mxu0 0.0
  %61 = vmatpush.msra.mxu0 0.0
  %62 = vmatpush.msra.mxu0 0.0
  %63 = vmatpush.msra.mxu0 0.0
  %64 = vmatpush.msra.mxu0 0.0
  %65 = vmatpush.msra.mxu0 0.0
  %66 = vmatpush.msra.mxu0 0.0
  %67 = vmatpush.msra.mxu0 0.0
  %68 = vmatpush.msra.mxu0 0.0
  %69 = vmatpush.msra.mxu0 0.0
  %70 = vmatpush.msra.mxu0 %v41
  %71 = vmatpush.msra.mxu0 %v40
  %72 = vmatmul.f32.gmra.mxu0 %v51
  %v73 = vpop.f32.mrf.mxu0
  %v74 = vadd.f32 0.0, %v73
  %75 = vmatmul.f32.gmra.mxu0 %v54
  %v76 = vpop.f32.mrf.mxu0
  %v77 = vadd.f32 0.0, %v76
  %78 = vdwg.mxu0
  %v79 = vld [vmem:[%s2] sm:$0xf]
  %v80 = vld [vmem:[%s3] sm:$0xf]
  %vm81 = vcmask 31744
  %v83 = vsel %vm81, %v74, 0
  %v86 = vsel %vm81, %v77, 0
  %vm88 = vcmask 1043456
  %v90 = vsel %vm88, %v80, 0
  %92 = vmatpush.msra.mxu0 0.0
  %93 = vmatpush.msra.mxu0 0.0
  %94 = vmatpush.msra.mxu0 0.0
  %95 = vmatpush.msra.mxu0 0.0
  %96 = vmatpush.msra.mxu0 0.0
  %97 = vmatpush.msra.mxu0 0.0
  %98 = vmatpush.msra.mxu0 0.0
  %99 = vmatpush.msra.mxu0 0.0
  %100 = vmatpush.msra.mxu0 0.0
  %101 = vmatpush.msra.mxu0 0.0
  %102 = vmatpush.msra.mxu0 0.0
  %103 = vmatpush.msra.mxu0 0.0
  %104 = vmatpush.msra.mxu0 0.0
  %105 = vmatpush.msra.mxu0 0.0
  %106 = vmatpush.msra.mxu0 0.0
  %107 = vmatpush.msra.mxu0 %v90
  %108 = vmatmul.f32.gmra.mxu0 %v83
  %v109 = vpop.f32.mrf.mxu0
  %v110 = vadd.f32 0.0, %v109
  %111 = vmatmul.f32.gmra.mxu0 %v86
  %v112 = vpop.f32.mrf.mxu0
  %v113 = vadd.f32 0.0, %v112
  %114 = vdwg.mxu0
  %v116 = vsel %vm81, %v40, 0
  %v119 = vsel %vm81, %v41, 0
  %v122 = vsel %vm88, %v79, 0
  %124 = vmatpush.msra.mxu0 0.0
  %125 = vmatpush.msra.mxu0 0.0
  %126 = vmatpush.msra.mxu0 0.0
  %127 = vmatpush.msra.mxu0 0.0
  %128 = vmatpush.msra.mxu0 0.0
  %129 = vmatpush.msra.mxu0 0.0
  %130 = vmatpush.msra.mxu0 0.0
  %131 = vmatpush.msra.mxu0 0.0
  %132 = vmatpush.msra.mxu0 0.0
  %133 = vmatpush.msra.mxu0 0.0
  %134 = vmatpush.msra.mxu0 0.0
  %135 = vmatpush.msra.mxu0 0.0
  %136 = vmatpush.msra.mxu0 0.0
  %137 = vmatpush.msra.mxu0 0.0
  %138 = vmatpush.msra.mxu0 0.0
  %139 = vmatpush.msra.mxu0 %v122
  %140 = vmatmul.f32.gmra.mxu0 %v116
  %v141 = vpop.f32.mrf.mxu0
  %v142 = vadd.f32 %v110, %v141
  %143 = vmatmul.f32.gmra.mxu0 %v119
  %v144 = vpop.f32.mrf.mxu0
  %v145 = vadd.f32 %v113, %v144
  %146 = vdwg.mxu0
  %v147 = vld [vmem:[%s4] sm:$0x1]
  %v149 = vperm.slane %v147, 0
  %v151 = vadd.f32 %v142, %v149
  %v152 = vadd.f32 %v145, %v149
  %v153 = vmax.f32 %v151, 0.0
  %v154 = vmax.f32 %v152, 0.0
  %v155 = vld [vmem:[%s5] sm:$0xff]
  %v156 = vld [vmem:[%s5 + $0x8] sm:$0xff]
  %v158 = vsel %vm49, %v153, 0
  %v161 = vsel %vm49, %v154, 0
  %163 = vmatpush.msra.mxu0 0.0
  %164 = vmatpush.msra.mxu0 0.0
  %165 = vmatpush.msra.mxu0 0.0
  %166 = vmatpush.msra.mxu0 0.0
  %167 = vmatpush.msra.mxu0 0.0
  %168 = vmatpush.msra.mxu0 0.0
  %169 = vmatpush.msra.mxu0 0.0
  %170 = vmatpush.msra.mxu0 0.0
  %171 = vmatpush.msra.mxu0 0.0
  %172 = vmatpush.msra.mxu0 0.0
  %173 = vmatpush.msra.mxu0 0.0
  %174 = vmatpush.msra.mxu0 0.0
  %175 = vmatpush.msra.mxu0 0.0
  %176 = vmatpush.msra.mxu0 0.0
  %177 = vmatpush.msra.mxu0 %v156
  %178 = vmatpush.msra.mxu0 %v155
  %179 = vmatmul.f32.gmra.mxu0 %v158
  %v180 = vpop.f32.mrf.mxu0
  %v181 = vadd.f32 0.0, %v180
  %182 = vmatmul.f32.gmra.mxu0 %v161
  %v183 = vpop.f32.mrf.mxu0
  %v184 = vadd.f32 0.0, %v183
  %185 = vdwg.mxu0
  %v186 = vxor.u32 %v181, 2147483648
  %v187 = vxor.u32 %v184, 2147483648
  %v188 = vmul.f32 %v186, 1.442695
  %v189 = vpow.pop %v188
  %v190 = vmul.f32 %v187, 1.442695
  %v191 = vpow.pop %v190
  %v192 = vadd.f32 %v189, 1.0
  %v193 = vadd.f32 %v191, 1.0
  %v194 = vrcp.pop %v192
  %v195 = vmul.f32 %v192, %v194
  %v196 = vsub.f32 1.0, %v195
  %v197 = vmul.f32 %v194, %v196
  %v198 = vadd.f32 %v194, %v197
  %vm199 = vweird.f32 %v192
  %vm200 = vweird.f32 %v194
  %vm201 = vmor %vm199, %vm200
  %v202 = vsel %vm201, %v194, %v198
  %v203 = vand.u32 2147483647, %v192
  %vm204 = vcmp.eq.f32.partialorder %v203, 8.507059e+37
  %v205 = vand.u32 %v192, 2147483648
  %v206 = vor.u32 1.1754944e-38, %v205
  %v207 = vsel %vm204, %v206, %v202
  %v208 = vmul.f32 1.0, %v207
  %v209 = vrcp.pop %v193
  %v210 = vmul.f32 %v193, %v209
  %v211 = vsub.f32 1.0, %v210
  %v212 = vmul.f32 %v209, %v211
  %v213 = vadd.f32 %v209, %v212
  %vm214 = vweird.f32 %v193
  %vm215 = vweird.f32 %v209
  %vm216 = vmor %vm214, %vm215
  %v217 = vsel %vm216, %v209, %v213
  %v218 = vand.u32 2147483647, %v193
  %vm219 = vcmp.eq.f32.partialorder %v218, 8.507059e+37
  %v220 = vand.u32 %v193, 2147483648
  %v221 = vor.u32 1.1754944e-38, %v220
  %v222 = vsel %vm219, %v221, %v217
  %v223 = vmul.f32 1.0, %v222
  %vm224 = vcmask 7168
  %225 = vst.msk [vmem:[%s12] sm:$0xff] %vm224, %v208
  %226 = vst.msk [vmem:[%s12 + $0x8] sm:$0xff] %vm224, %v223
  %vm227 = vcmp.gt.f32.partialorder %v42, 0.0
  %vm228 = vcmp.gt.f32.partialorder %v43, 0.0
  %v229 = vsel %vm227, %v208, -1.0
  %v230 = vsel %vm228, %v223, -1.0
  %v231 = vlaneseq
  %v232 = vshrl.u32 %v231, 7
  %v233 = vadd.s32 %v232, 8
  %v234 = vlaneseq
  %v235 = vand.u32 %v234, 127
  %vm236 = vcmask 15360
  %v238 = vsel %vm236, %v44, 0
  %v241 = vsel %vm236, %v45, 0
  %vm243 = vcmask 1041408
  %v245 = vsel %vm243, %v46, 0
  %247 = vmatpush.msra.mxu0 0.0
  %248 = vmatpush.msra.mxu0 0.0
  %249 = vmatpush.msra.mxu0 0.0
  %250 = vmatpush.msra.mxu0 0.0
  %251 = vmatpush.msra.mxu0 0.0
  %252 = vmatpush.msra.mxu0 0.0
  %253 = vmatpush.msra.mxu0 0.0
  %254 = vmatpush.msra.mxu0 0.0
  %255 = vmatpush.msra.mxu0 0.0
  %256 = vmatpush.msra.mxu0 0.0
  %257 = vmatpush.msra.mxu0 0.0
  %258 = vmatpush.msra.mxu0 0.0
  %259 = vmatpush.msra.mxu0 0.0
  %260 = vmatpush.msra.mxu0 0.0
  %261 = vmatpush.msra.mxu0 0.0
  %262 = vmatpush.msra.mxu0 %v245
  %263 = vmatmul.f32.gmra.mxu0 %v238
  %v264 = vpop.f32.mrf.mxu0
  %v265 = vadd.f32 0.0, %v264
  %266 = vmatmul.f32.gmra.mxu0 %v241
  %v267 = vpop.f32.mrf.mxu0
  %v268 = vadd.f32 0.0, %v267
  %269 = vdwg.mxu0
  %vm270 = vcmp.eq.s32.totalorder %v232, %v235
  %vm271 = vcmp.eq.s32.totalorder %v233, %v235
  %273 = vset.pattern.permute.xlu0 0
  %274 = vperm.xlu0 %273, %v229
  %v275 = vpop.permute.xlu0 %274
  %278 = vset.pattern.permute.xlu0 0
  %279 = vperm.xlu0 %278, %v230
  %v280 = vpop.permute.xlu0 %279
  %v282 = vsel %vm270, %v275, 0.0
  %v283 = vsel %vm271, %v280, 0.0
  %v285 = vsel %vm49, %v265, 0
  %v288 = vsel %vm49, %v268, 0
  %290 = vmatpush.msra.mxu0 0.0
  %291 = vmatpush.msra.mxu0 0.0
  %292 = vmatpush.msra.mxu0 0.0
  %293 = vmatpush.msra.mxu0 0.0
  %294 = vmatpush.msra.mxu0 0.0
  %295 = vmatpush.msra.mxu0 0.0
  %296 = vmatpush.msra.mxu0 0.0
  %297 = vmatpush.msra.mxu0 0.0
  %298 = vmatpush.msra.mxu0 0.0
  %299 = vmatpush.msra.mxu0 0.0
  %300 = vmatpush.msra.mxu0 0.0
  %301 = vmatpush.msra.mxu0 0.0
  %302 = vmatpush.msra.mxu0 0.0
  %303 = vmatpush.msra.mxu0 0.0
  %304 = vmatpush.msra.mxu0 %v283
  %305 = vmatpush.msra.mxu0 %v282
  %306 = vmatmul.f32.gmra.mxu0 %v285
  %v307 = vpop.f32.mrf.mxu0
  %v308 = vadd.f32 0.0, %v307
  %309 = vmatmul.f32.gmra.mxu0 %v288
  %v310 = vpop.f32.mrf.mxu0
  %v311 = vadd.f32 0.0, %v310
  %312 = vdwg.mxu0
  %v314 = vsel %vm49, %v282, 0
  %v317 = vsel %vm49, %v283, 0
  %319 = vmatpush.msra.mxu0 0.0
  %320 = vmatpush.msra.mxu0 0.0
  %321 = vmatpush.msra.mxu0 0.0
  %322 = vmatpush.msra.mxu0 0.0
  %323 = vmatpush.msra.mxu0 0.0
  %324 = vmatpush.msra.mxu0 0.0
  %325 = vmatpush.msra.mxu0 0.0
  %326 = vmatpush.msra.mxu0 0.0
  %327 = vmatpush.msra.mxu0 0.0
  %328 = vmatpush.msra.mxu0 0.0
  %329 = vmatpush.msra.mxu0 0.0
  %330 = vmatpush.msra.mxu0 0.0
  %331 = vmatpush.msra.mxu0 0.0
  %332 = vmatpush.msra.mxu0 0.0
  %333 = vmatpush.msra.mxu0 %v268
  %334 = vmatpush.msra.mxu0 %v265
  %335 = vmatmul.f32.gmra.mxu0 %v314
  %v336 = vpop.f32.mrf.mxu0
  %v337 = vadd.f32 0.0, %v336
  %338 = vmatmul.f32.gmra.mxu0 %v317
  %v339 = vpop.f32.mrf.mxu0
  %v340 = vadd.f32 0.0, %v339
  %341 = vdwg.mxu0
  %vm342 = vcmp.gt.f32.partialorder %v308, %v337
  %vm343 = vcmp.gt.f32.partialorder %v311, %v340
  %vm344 = vcmp.eq.f32.partialorder %v308, %v337
  %vm345 = vcmp.eq.f32.partialorder %v311, %v340
  %vm346 = vcmp.lt.s32.totalorder %v235, %v232
  %vm347 = vcmp.lt.s32.totalorder %v235, %v233
  %vm348 = vmand %vm344, %vm346
  %vm349 = vmand %vm345, %vm347
  %vm350 = vmor %vm342, %vm348
  %vm351 = vmor %vm343, %vm349
  %vm352 = vcmp.gt.f32.partialorder %v265, 0.0
  %vm353 = vcmp.gt.f32.partialorder %v268, 0.0
  %vm354 = vmand %vm350, %vm352
  %vm355 = vmand %vm351, %vm353
  %v356 = vsel %vm354, 1.0, 0.0
  %v357 = vsel %vm355, 1.0, 0.0
  %v358 = vsel %vm49, %v356, 0.0
  %359 = vadd.xlane.f32.xlu0 %v358
  %v360 = vpop.xlane.xlu0 %359
  %v361 = vsel %vm49, %v357, 0.0
  %362 = vadd.xlane.f32.xlu0 %v361
  %v363 = vpop.xlane.xlu0 %362
  %v364 = vld [vmem:[%s8] sm:$0x3]
  %v366 = vsel %vm243, %v364, 0
  %368 = vmatpush.msra.mxu0 0.0
  %369 = vmatpush.msra.mxu0 0.0
  %370 = vmatpush.msra.mxu0 0.0
  %371 = vmatpush.msra.mxu0 0.0
  %372 = vmatpush.msra.mxu0 0.0
  %373 = vmatpush.msra.mxu0 0.0
  %374 = vmatpush.msra.mxu0 0.0
  %375 = vmatpush.msra.mxu0 0.0
  %376 = vmatpush.msra.mxu0 0.0
  %377 = vmatpush.msra.mxu0 0.0
  %378 = vmatpush.msra.mxu0 0.0
  %379 = vmatpush.msra.mxu0 0.0
  %380 = vmatpush.msra.mxu0 0.0
  %381 = vmatpush.msra.mxu0 0.0
  %382 = vmatpush.msra.mxu0 0.0
  %383 = vmatpush.msra.mxu0 %v366
  %384 = vmatmul.f32.gmra.mxu0 %v238
  %v385 = vpop.f32.mrf.mxu0
  %v386 = vadd.f32 0.0, %v385
  %387 = vmatmul.f32.gmra.mxu0 %v241
  %v388 = vpop.f32.mrf.mxu0
  %v389 = vadd.f32 0.0, %v388
  %390 = vdwg.mxu0
  %vm391 = vcmp.lt.f32.partialorder %v360, %v386
  %vm392 = vcmp.lt.f32.partialorder %v363, %v389
  %vm393 = vmand %vm391, %vm227
  %vm394 = vmand %vm392, %vm228
  %v395 = vsel %vm393, 1.0, 0.0
  %v396 = vsel %vm394, 1.0, 0.0
  %397 = vst.msk [vmem:[%s11] sm:$0xff] %vm224, %v395
  %398 = vst.msk [vmem:[%s11 + $0x8] sm:$0xff] %vm224, %v396
  %400 = vset.pattern.permute.xlu0 0
  %401 = vperm.xlu0 %400, %v208
  %v402 = vpop.permute.xlu0 %401
  %405 = vset.pattern.permute.xlu0 0
  %406 = vperm.xlu0 %405, %v223
  %v407 = vpop.permute.xlu0 %406
  %v409 = vmul.f32 %v153, %v402
  %v410 = vmul.f32 %v154, %v407
  %412 = vset.pattern.permute.xlu0 0
  %413 = vperm.xlu0 %412, %v395
  %v414 = vpop.permute.xlu0 %413
  %417 = vset.pattern.permute.xlu0 0
  %418 = vperm.xlu0 %417, %v396
  %v419 = vpop.permute.xlu0 %418
  %v421 = vmul.f32 %v409, %v414
  %v422 = vmul.f32 %v410, %v419
  %423 = vst.msk [vmem:[%s10] sm:$0xff] %vm49, %v421
  %424 = vst.msk [vmem:[%s10 + $0x8] sm:$0xff] %vm49, %v422
  %v425 = vsel %vm49, %v46, 0
  %427 = vmatpush.msra.mxu0 0.0
  %428 = vmatpush.msra.mxu0 0.0
  %429 = vmatpush.msra.mxu0 0.0
  %430 = vmatpush.msra.mxu0 0.0
  %431 = vmatpush.msra.mxu0 0.0
  %432 = vmatpush.msra.mxu0 0.0
  %433 = vmatpush.msra.mxu0 0.0
  %434 = vmatpush.msra.mxu0 0.0
  %435 = vmatpush.msra.mxu0 0.0
  %436 = vmatpush.msra.mxu0 0.0
  %437 = vmatpush.msra.mxu0 0.0
  %438 = vmatpush.msra.mxu0 0.0
  %439 = vmatpush.msra.mxu0 0.0
  %440 = vmatpush.msra.mxu0 0.0
  %441 = vmatpush.msra.mxu0 %v396
  %442 = vmatpush.msra.mxu0 %v395
  %443 = vmatmul.f32.gmra.mxu0 %v425
  %v444 = vpop.f32.mrf.mxu0
  %v445 = vadd.f32 0.0, %v444
  %446 = vdwg.mxu0
  %v447 = vmax.f32 %v445, 1.0
  %448 = vmatpush.msra.mxu0 0.0
  %449 = vmatpush.msra.mxu0 0.0
  %450 = vmatpush.msra.mxu0 0.0
  %451 = vmatpush.msra.mxu0 0.0
  %452 = vmatpush.msra.mxu0 0.0
  %453 = vmatpush.msra.mxu0 0.0
  %454 = vmatpush.msra.mxu0 0.0
  %455 = vmatpush.msra.mxu0 0.0
  %456 = vmatpush.msra.mxu0 0.0
  %457 = vmatpush.msra.mxu0 0.0
  %458 = vmatpush.msra.mxu0 0.0
  %459 = vmatpush.msra.mxu0 0.0
  %460 = vmatpush.msra.mxu0 0.0
  %461 = vmatpush.msra.mxu0 0.0
  %462 = vmatpush.msra.mxu0 %v422
  %463 = vmatpush.msra.mxu0 %v421
  %464 = vmatmul.f32.gmra.mxu0 %v425
  %v465 = vpop.f32.mrf.mxu0
  %v466 = vadd.f32 0.0, %v465
  %467 = vdwg.mxu0
  %469 = vset.pattern.permute.xlu0 0
  %470 = vperm.xlu0 %469, %v447
  %v471 = vpop.permute.xlu0 %470
  %v473 = vrcp.pop %v471
  %v474 = vmul.f32 %v471, %v473
  %v475 = vsub.f32 1.0, %v474
  %v476 = vmul.f32 %v473, %v475
  %v477 = vadd.f32 %v473, %v476
  %vm478 = vweird.f32 %v471
  %vm479 = vweird.f32 %v473
  %vm480 = vmor %vm478, %vm479
  %v481 = vsel %vm480, %v473, %v477
  %v482 = vand.u32 2147483647, %v471
  %vm483 = vcmp.eq.f32.partialorder %v482, 8.507059e+37
  %v484 = vand.u32 %v471, 2147483648
  %v485 = vor.u32 1.1754944e-38, %v484
  %v486 = vsel %vm483, %v485, %v481
  %v487 = vmul.f32 %v466, %v486
  %vm488 = vcmask 123904
  %489 = vst.msk [vmem:[%s14] sm:$0x3] %vm488, %v487
  %490 = vset.pattern.permute.xlu0 0
  %491 = vperm.xlu0 %490, %v44
  %v492 = vpop.permute.xlu0 %491
  %494 = vset.pattern.permute.xlu0 0
  %495 = vperm.xlu0 %494, %v45
  %v496 = vpop.permute.xlu0 %495
  %v498 = vmul.f32 %v421, %v492
  %v499 = vmul.f32 %v422, %v496
  %v500 = vsel %vm49, %v498, -inf
  %v501 = vsel %vm49, %v499, -inf
  %v502 = vmax.f32 %v500, %v501
  %v503 = vrot.slane %v502, 4
  %v504 = vmax.f32 %v502, %v503
  %v505 = vrot.slane %v504, 2
  %v506 = vmax.f32 %v504, %v505
  %v507 = vrot.slane %v506, 1
  %v508 = vmax.f32 %v506, %v507
  %vm509 = vcmp.eq.s32.totalorder %v232, 0
  %v510 = vsel %vm509, %v508, 0.0
  %511 = vset.pattern.permute.xlu0 1
  %512 = vperm.xlu0 %511, %v44
  %v513 = vpop.permute.xlu0 %512
  %515 = vset.pattern.permute.xlu0 1
  %516 = vperm.xlu0 %515, %v45
  %v517 = vpop.permute.xlu0 %516
  %v519 = vmul.f32 %v421, %v513
  %v520 = vmul.f32 %v422, %v517
  %v521 = vsel %vm49, %v519, -inf
  %v522 = vsel %vm49, %v520, -inf
  %v523 = vmax.f32 %v521, %v522
  %v524 = vrot.slane %v523, 4
  %v525 = vmax.f32 %v523, %v524
  %v526 = vrot.slane %v525, 2
  %v527 = vmax.f32 %v525, %v526
  %v528 = vrot.slane %v527, 1
  %v529 = vmax.f32 %v527, %v528
  %vm530 = vcmp.eq.s32.totalorder %v232, 1
  %v531 = vsel %vm530, %v529, %v510
  %532 = vst.msk [vmem:[%s13] sm:$0x3] %vm488, %v531
  // Predicated region
  $region42: #{topk_forward.3} parent=0 // pred_check
    _
  $region43: #{topk_forward.3} parent=0 // pred_check_branch
    %534 = sbr.rel (0) target = $region45
  $region44: #{topk_forward.3} parent=0 // pred_region
    _
  $region45: #{topk_forward.3} parent=0 // pred_fallthru
    _
  // Predicated region
  $region46: #{topk_forward.3} parent=0 // pred_check
    _
  $region47: #{topk_forward.3} parent=0 // pred_check_branch
    %536 = sbr.rel (0) target = $region49
  $region48: #{topk_forward.3} parent=0 // pred_region
    _
  $region49: #{topk_forward.3} parent=0 // pred_fallthru
    _
  // Predicated region
  $region50: #{topk_forward.3} parent=0 // pred_check
    _
  $region51: #{topk_forward.3} parent=0 // pred_check_branch
    %538 = sbr.rel (0) target = $region53
  $region52: #{topk_forward.3} parent=0 // pred_region
    _
  $region53: #{topk_forward.3} parent=0 // pred_fallthru
    _
  // Predicated region
  $region54: #{topk_forward.3} parent=0 // pred_check
    _
  $region55: #{topk_forward.3} parent=0 // pred_check_branch
    %540 = sbr.rel (0) target = $region57
  $region56: #{topk_forward.3} parent=0 // pred_region
    _
  $region57: #{topk_forward.3} parent=0 // pred_fallthru
    _
  // Predicated region
  $region58: #{topk_forward.3} parent=0 // pred_check
    _
  $region59: #{topk_forward.3} parent=0 // pred_check_branch
    %542 = sbr.rel (0) target = $region61
  $region60: #{topk_forward.3} parent=0 // pred_region
    _
  $region61: #{topk_forward.3} parent=0 // pred_fallthru
    _
  // Predicated region
  $region62: #{topk_forward.3} parent=0 // pred_check
    _
  $region63: #{topk_forward.3} parent=0 // pred_check_branch
    %544 = sbr.rel (0) target = $region65
  $region64: #{topk_forward.3} parent=0 // pred_region
    _
  $region65: #{topk_forward.3} parent=0 // pred_fallthru
    _
  // Predicated region
  $region66: #{topk_forward.3} parent=0 // pred_check
    _
  $region67: #{topk_forward.3} parent=0 // pred_check_branch
    %546 = sbr.rel (0) target = $region69
  $region68: #{topk_forward.3} parent=0 // pred_region
    _
  $region69: #{topk_forward.3} parent=0 // pred_fallthru
    _
  // Predicated region
  $region70: #{topk_forward.3} parent=0 // pred_check
    _
  $region71: #{topk_forward.3} parent=0 // pred_check_branch
    %548 = sbr.rel (0) target = $region73
  $region72: #{topk_forward.3} parent=0 // pred_region
    _
  $region73: #{topk_forward.3} parent=0 // pred_fallthru
    _
  // Predicated region
  $region74: #{topk_forward.3} parent=0 // pred_check
    _
  $region75: #{topk_forward.3} parent=0 // pred_check_branch
    %550 = sbr.rel (0) target = $region77
  $region76: #{topk_forward.3} parent=0 // pred_region
    _
  $region77: #{topk_forward.3} parent=0 // pred_fallthru
    _
  // Predicated region
  $region78: #{topk_forward.3} parent=0 // pred_check
    _
  $region79: #{topk_forward.3} parent=0 // pred_check_branch
    %552 = sbr.rel (0) target = $region81
  $region80: #{topk_forward.3} parent=0 // pred_region
    _
  $region81: #{topk_forward.3} parent=0 // pred_fallthru
    _

</llo_original>
